<compile_context>
chip_gen: v7x
topology: tpu7x:2x2x1
jax: 0.10.0
libtpu: 0.0.40
codegen_flags: <defaults>
</compile_context>

<pallas_src>
import math

import jax
import jax.numpy as jnp
from jax.experimental import pallas as pl
from jax.experimental.pallas import tpu as pltpu  # noqa: F401  (TPU backend assumed)

# ---------------------------------------------------------------------------
# Model configuration (small shapes consistent with the PyTorch module).
# ---------------------------------------------------------------------------
B = 2                     # batch
IN_CH_PROFILE = 8         # in_channels_profile
PROFILE_HIST_LEN = 16     # profile_hist_len
IN_CH_CAMPAIGN = 6        # in_channels_campaign
IN_CH_MEETING = 4         # in_channels_meeting
IN_CH_ACTION = 5          # in_channels_action
SEQ_LEN = 8               # campaign / meeting history length (must be equal to merge)
SEQ_CAMPAIGN = SEQ_LEN
SEQ_MEETING = SEQ_LEN
KERNEL_SIZE = 3
HIDDEN_CAMPAIGN = 10      # hidden_size_campaign
HIDDEN_MEETING = 5        # hidden_size_meeting
OUT_CH_PROFILE = 10       # out_channel_profile
OUT_CHANNEL = 1
CONV1_PAD = 2

assert SEQ_CAMPAIGN == SEQ_MEETING  # single merged recurrence assumes equal lengths

# HistoricalConv1D derived sizes (conv1d_output_len with stride=1, dilation=1).
C1 = IN_CH_PROFILE // 2                            # conv1 out channels = 4
C2 = C1 // 2                                       # conv2 out channels = 2
K1, K2, K3 = KERNEL_SIZE, 2 * KERNEL_SIZE, KERNEL_SIZE
L1 = PROFILE_HIST_LEN + 2 * CONV1_PAD - (K1 - 1)   # 18  (hidden_len_l1)
L2 = L1 - (K2 - 1)                                 # 13  (hidden_len_l2)
L3 = L2 - (K3 - 1)                                 # 11  (hidden_len_l3)

C_TOT = IN_CH_CAMPAIGN + IN_CH_MEETING             # 10  (merged GRU input)
H_TOT = HIDDEN_CAMPAIGN + HIDDEN_MEETING           # 15  (merged GRU hidden)

LINEAR_IN = HIDDEN_CAMPAIGN + HIDDEN_MEETING + OUT_CH_PROFILE * L3 + IN_CH_ACTION  # 130
F2 = LINEAR_IN // 2                                # 65
F4 = LINEAR_IN // 4                                # 32

PACK_COLS = 128           # lane-dense packed-parameter slab width


# ---------------------------------------------------------------------------
# Packed-parameter layout: name -> (row_offset, rows, cols).  Offsets 8-aligned
# so every in-kernel static slice starts on a sublane-tile boundary.
# ---------------------------------------------------------------------------
def _pack_layout():
    layout = {}
    off = 0

    def add(name, rows, cols):
        nonlocal off
        layout[name] = (off, rows, cols)
        off += ((rows + 7) // 8) * 8

    add("w1", K1 * IN_CH_PROFILE, C1)          # (24, 4)  im2col conv1
    add("b1", 1, C1)
    add("w2", K2 * C1, C2)                     # (24, 2)  im2col conv2
    add("b2", 1, C2)
    add("w3", K3 * C2, OUT_CH_PROFILE)         # (6, 10)  im2col conv3
    add("b3", 1, OUT_CH_PROFILE)
    add("w_ih", C_TOT, 3 * H_TOT)              # (10, 45) merged GRU input weights
    add("b_ih", 1, 3 * H_TOT)
    add("w_hh", H_TOT, 3 * H_TOT)              # (15, 45) merged GRU hidden weights
    add("b_hh", 1, 3 * H_TOT)
    add("ws_prof", L3 * OUT_CH_PROFILE, F2)    # (110, 65) state_baseline, profile rows
    add("ws_cm", H_TOT, F2)                    # (15, 65)  state_baseline, [camp|meet] rows
    add("ws_act", IN_CH_ACTION, F2)            # (5, 65)   state_baseline, action rows
    add("bs", 1, F2)
    add("wa", IN_CH_ACTION, F2)                # (5, 65)   action_baseline
    add("ba", 1, F2)
    add("wf1", F2, F4)                         # (65, 32)  fc1
    add("bf1", 1, F4)
    add("wf2", F4, OUT_CHANNEL)                # (32, 1)   fc2
    add("bf2", 1, OUT_CHANNEL)
    return layout, ((off + 7) // 8) * 8


_PACK_LAYOUT, _PACK_ROWS = _pack_layout()


# ---------------------------------------------------------------------------
# Fused kernel: whole forward pass, everything VMEM-resident, no grid.
# ---------------------------------------------------------------------------
def _inv_sales_critic_kernel(profile_ref, camp_ref, meet_ref, action_ref,
                             params_ref, out_ref):
    f32 = jnp.float32
    batch = profile_ref.shape[0]

    def P(name):
        off, rows, cols = _PACK_LAYOUT[name]
        return params_ref[off:off + rows, 0:cols]

    def dot(a, b):
        return jnp.dot(a, b, preferred_element_type=f32)

    # --- profile branch: 3x (im2col + matmul + bias + ReLU), whole batch stacked.
    # NLC layout throughout -> no transposes; conv1 padding done via zero concat.
    pad_zeros = jnp.zeros((CONV1_PAD, IN_CH_PROFILE), f32)

    def im2col(per_batch_2d, l_out, k_taps):
        blocks = []
        for xb in per_batch_2d:                       # xb: (L_in, C_in)
            taps = [xb[k:k + l_out, :] for k in range(k_taps)]
            blocks.append(jnp.concatenate(taps, axis=1))
        return jnp.concatenate(blocks, axis=0)        # (B*l_out, K*C_in)

    xpad = [jnp.concatenate([pad_zeros, profile_ref[b], pad_zeros], axis=0)
            for b in range(batch)]                                        # (Lp+4, Cp)

    col1 = im2col(xpad, L1, K1)                                           # (B*L1, 24)
    y1 = jnp.maximum(dot(col1, P("w1")) + P("b1"), 0.0)                   # (B*L1, C1)

    col2 = im2col([y1[b * L1:(b + 1) * L1, :] for b in range(batch)], L2, K2)
    y2 = jnp.maximum(dot(col2, P("w2")) + P("b2"), 0.0)                   # (B*L2, C2)

    col3 = im2col([y2[b * L2:(b + 1) * L2, :] for b in range(batch)], L3, K3)
    y3 = jnp.maximum(dot(col3, P("w3")) + P("b3"), 0.0)                   # (B*L3, C3)

    # flatten (L3, C3) -> (1, L3*C3) per batch row via lane concat; the torch
    # F.relu(flatten(...)) is folded away (y3 is already ReLU'd, ReLU idempotent).
    prof_rows = []
    for b in range(batch):
        y3b = y3[b * L3:(b + 1) * L3, :]
        prof_rows.append(jnp.concatenate([y3b[l:l + 1, :] for l in range(L3)], axis=1))
    prof_flat = jnp.concatenate(prof_rows, axis=0)                        # (B, 110)

    # --- campaign + meeting GRUs merged into one recurrence (fused gates).
    # Input-gate matmuls hoisted out of the loop; only h @ W_hh is serialized.
    seq_rows = jnp.concatenate(
        [jnp.concatenate([camp_ref[b], meet_ref[b]], axis=1) for b in range(batch)],
        axis=0)                                                           # (B*T, Cc+Cm)
    gi_all = dot(seq_rows, P("w_ih")) + P("b_ih")                         # (B*T, 3H)

    w_hh = P("w_hh")
    b_hh = P("b_hh")
    h = jnp.zeros((batch, H_TOT), f32)                                    # h0 = 0
    for t in range(SEQ_LEN):                                              # static unroll
        gi = jnp.concatenate(
            [gi_all[b * SEQ_LEN + t:b * SEQ_LEN + t + 1, :] for b in range(batch)],
            axis=0)                                                       # (B, 3H)
        gh = dot(h, w_hh) + b_hh                                          # (B, 3H)
        r = jax.nn.sigmoid(gi[:, :H_TOT] + gh[:, :H_TOT])
        z = jax.nn.sigmoid(gi[:, H_TOT:2 * H_TOT] + gh[:, H_TOT:2 * H_TOT])
        n = jnp.tanh(gi[:, 2 * H_TOT:] + r * gh[:, 2 * H_TOT:])
        h = (1.0 - z) * n + z * h
    h_cm = jnp.maximum(h, 0.0)          # relu(squeeze(h_n)) for both GRUs; [camp|meet]

    # --- head -----------------------------------------------------------------
    act = action_ref[...]                                                 # (B, A)
    state_value = jnp.maximum(
        dot(prof_flat, P("ws_prof")) + dot(h_cm, P("ws_cm"))
        + dot(act, P("ws_act")) + P("bs"), 0.0)
    action_value = jnp.maximum(dot(act, P("wa")) + P("ba"), 0.0)
    hid = dot(state_value + action_value, P("wf1")) + P("bf1")
    out = dot(hid, P("wf2")) + P("bf2")
    out_ref[...] = out.astype(out_ref.dtype)


# ---------------------------------------------------------------------------
# Parameter init: torch-layout weights -> kernel-ready layouts -> packed slab.
# ---------------------------------------------------------------------------
def _merge_gru(wih_c, whh_c, bih_c, bhh_c, wih_m, whh_m, bih_m, bhh_m):
    """Merge two torch GRUs into block-diagonal fused-gate weights.

    torch layouts: w_ih (3H, C), w_hh (3H, H), biases (3H,), gate order [r; z; n].
    Returns W_ih (C_TOT, 3*H_TOT), W_hh (H_TOT, 3*H_TOT), b_ih/b_hh (1, 3*H_TOT)
    with hidden layout [campaign | meeting] inside each gate block.
    """
    f32 = jnp.float32
    Hc, Hm, Cc = HIDDEN_CAMPAIGN, HIDDEN_MEETING, IN_CH_CAMPAIGN
    Ht = H_TOT
    w_ih = jnp.zeros((C_TOT, 3 * Ht), f32)
    w_hh = jnp.zeros((Ht, 3 * Ht), f32)
    b_ih = jnp.zeros((1, 3 * Ht), f32)
    b_hh = jnp.zeros((1, 3 * Ht), f32)
    for g in range(3):
        ccol = slice(g * Ht, g * Ht + Hc)
        mcol = slice(g * Ht + Hc, (g + 1) * Ht)
        w_ih = w_ih.at[:Cc, ccol].set(wih_c[g * Hc:(g + 1) * Hc, :].T)
        w_ih = w_ih.at[Cc:, mcol].set(wih_m[g * Hm:(g + 1) * Hm, :].T)
        w_hh = w_hh.at[:Hc, ccol].set(whh_c[g * Hc:(g + 1) * Hc, :].T)
        w_hh = w_hh.at[Hc:, mcol].set(whh_m[g * Hm:(g + 1) * Hm, :].T)
        b_ih = b_ih.at[0, ccol].set(bih_c[g * Hc:(g + 1) * Hc])
        b_ih = b_ih.at[0, mcol].set(bih_m[g * Hm:(g + 1) * Hm])
        b_hh = b_hh.at[0, ccol].set(bhh_c[g * Hc:(g + 1) * Hc])
        b_hh = b_hh.at[0, mcol].set(bhh_m[g * Hm:(g + 1) * Hm])
    return w_ih, w_hh, b_ih, b_hh


def init_params(key):
    f32 = jnp.float32
    ks = jax.random.split(key, 16)

    def xavier(k, shape, fan_in, fan_out):
        std = math.sqrt(2.0 / (fan_in + fan_out))
        return std * jax.random.normal(k, shape, dtype=f32)

    def uni(k, shape, bound):
        return jax.random.uniform(k, shape, dtype=f32, minval=-bound, maxval=bound)

    # --- torch-layout parameters -------------------------------------------
    w1_t = xavier(ks[0], (C1, IN_CH_PROFILE, K1), IN_CH_PROFILE * K1, C1 * K1)
    w2_t = xavier(ks[1], (C2, C1, K2), C1 * K2, C2 * K2)
    w3_t = xavier(ks[2], (OUT_CH_PROFILE, C2, K3), C2 * K3, OUT_CH_PROFILE * K3)
    b1_t = uni(ks[3], (C1,), 1.0 / math.sqrt(IN_CH_PROFILE * K1))
    b2_t = uni(ks[4], (C2,), 1.0 / math.sqrt(C1 * K2))
    b3_t = uni(ks[5], (OUT_CH_PROFILE,), 1.0 / math.sqrt(C2 * K3))

    def gru_torch(k, in_size, hidden):
        kk = jax.random.split(k, 4)
        bound = 1.0 / math.sqrt(hidden)
        return (uni(kk[0], (3 * hidden, in_size), bound),
                uni(kk[1], (3 * hidden, hidden), bound),
                uni(kk[2], (3 * hidden,), bound),
                uni(kk[3], (3 * hidden,), bound))

    wih_c, whh_c, bih_c, bhh_c = gru_torch(ks[6], IN_CH_CAMPAIGN, HIDDEN_CAMPAIGN)
    wih_m, whh_m, bih_m, bhh_m = gru_torch(ks[7], IN_CH_MEETING, HIDDEN_MEETING)

    w_state = xavier(ks[8], (F2, LINEAR_IN), LINEAR_IN, F2)
    b_state = uni(ks[9], (F2,), 1.0 / math.sqrt(LINEAR_IN))
    w_act = xavier(ks[10], (F2, IN_CH_ACTION), IN_CH_ACTION, F2)
    b_act = uni(ks[11], (F2,), 1.0 / math.sqrt(IN_CH_ACTION))
    w_fc1 = xavier(ks[12], (F4, F2), F2, F4)
    b_fc1 = uni(ks[13], (F4,), 1.0 / math.sqrt(F2))
    w_fc2 = xavier(ks[14], (OUT_CHANNEL, F4), F4, OUT_CHANNEL)
    b_fc2 = uni(ks[15], (OUT_CHANNEL,), 1.0 / math.sqrt(F4))

    # --- kernel-ready layouts ------------------------------------------------
    t = {}
    # Conv1d (C_out, C_in, K) -> im2col weight (K*C_in, C_out): [k*C_in+ci, co].
    t["w1"] = jnp.transpose(w1_t, (2, 1, 0)).reshape(K1 * IN_CH_PROFILE, C1)
    t["w2"] = jnp.transpose(w2_t, (2, 1, 0)).reshape(K2 * C1, C2)
    t["w3"] = jnp.transpose(w3_t, (2, 1, 0)).reshape(K3 * C2, OUT_CH_PROFILE)
    t["b1"] = b1_t.reshape(1, C1)
    t["b2"] = b2_t.reshape(1, C2)
    t["b3"] = b3_t.reshape(1, OUT_CH_PROFILE)

    t["w_ih"], t["w_hh"], t["b_ih"], t["b_hh"] = _merge_gru(
        wih_c, whh_c, bih_c, bhh_c, wih_m, whh_m, bih_m, bhh_m)

    # state_baseline W.T (130, 65), split by the torch cat order
    # [profile(110), meeting(5), campaign(10), action(5)].
    wt = w_state.T
    n_prof = OUT_CH_PROFILE * L3
    o_meet = n_prof + HIDDEN_MEETING
    o_camp = o_meet + HIDDEN_CAMPAIGN
    # torch flatten index is c*L3+l; kernel flatten index is l*C3+c -> reorder rows.
    t["ws_prof"] = (wt[:n_prof].reshape(OUT_CH_PROFILE, L3, F2)
                    .transpose(1, 0, 2).reshape(L3 * OUT_CH_PROFILE, F2))
    # merged hidden layout is [campaign | meeting] -> stack rows in that order.
    t["ws_cm"] = jnp.concatenate([wt[o_meet:o_camp], wt[n_prof:o_meet]], axis=0)
    t["ws_act"] = wt[o_camp:]
    t["bs"] = b_state.reshape(1, F2)

    t["wa"] = w_act.T
    t["ba"] = b_act.reshape(1, F2)
    t["wf1"] = w_fc1.T
    t["bf1"] = b_fc1.reshape(1, F4)
    t["wf2"] = w_fc2.T
    t["bf2"] = b_fc2.reshape(1, OUT_CHANNEL)

    # --- pack into one lane-dense slab ---------------------------------------
    packed = jnp.zeros((_PACK_ROWS, PACK_COLS), f32)
    for name, (off, rows, cols) in _PACK_LAYOUT.items():
        arr = t[name]
        assert arr.shape == (rows, cols), (name, arr.shape, (rows, cols))
        packed = packed.at[off:off + rows, :cols].set(arr)
    return packed


def _cost_estimate(args):
    macs = (B * L1 * K1 * IN_CH_PROFILE * C1
            + B * L2 * K2 * C1 * C2
            + B * L3 * K3 * C2 * OUT_CH_PROFILE
            + B * SEQ_LEN * 3 * (C_TOT * H_TOT + H_TOT * H_TOT)
            + B * (LINEAR_IN * F2 + IN_CH_ACTION * F2 + F2 * F4 + F4 * OUT_CHANNEL))
    transcendentals = B * SEQ_LEN * 3 * H_TOT
    bytes_accessed = sum(int(a.size) * a.dtype.itemsize for a in args) + B * OUT_CHANNEL * 4
    return pl.CostEstimate(flops=2 * macs, transcendentals=transcendentals,
                           bytes_accessed=bytes_accessed)


@jax.jit
def inv_sales_critic_forward(packed_params, cust_profile, campaign_history,
                             meeting_history, action_vector):
    """InvSalesCritic.forward.  No host-side layout ops: the kernel consumes the
    natural (B, L, C) / (B, T, C) layouts and handles conv padding / flatten /
    concat internally.  Single fused pallas_call, single packed-weights DMA."""
    f32 = jnp.float32
    args = (cust_profile.astype(f32),
            campaign_history.astype(f32),
            meeting_history.astype(f32),
            action_vector.astype(f32).reshape(action_vector.shape[0], -1),
            packed_params)
    return pl.pallas_call(
        _inv_sales_critic_kernel,
        out_shape=jax.ShapeDtypeStruct((cust_profile.shape[0], OUT_CHANNEL), f32),
        cost_estimate=_cost_estimate(args),
    )(*args)


if __name__ == "__main__":
    root = jax.random.PRNGKey(0)
    k_par, k_prof, k_camp, k_meet, k_act = jax.random.split(root, 5)

    packed_params = init_params(k_par)

    cust_profile = jax.random.normal(
        k_prof, (B, PROFILE_HIST_LEN, IN_CH_PROFILE), dtype=jnp.float32)
    campaign_history = jax.random.normal(
        k_camp, (B, SEQ_CAMPAIGN, IN_CH_CAMPAIGN), dtype=jnp.float32)
    meeting_history = jax.random.normal(
        k_meet, (B, SEQ_MEETING, IN_CH_MEETING), dtype=jnp.float32)
    action_vector = jax.random.normal(
        k_act, (B, IN_CH_ACTION), dtype=jnp.float32)

    out = inv_sales_critic_forward(packed_params, cust_profile, campaign_history,
                                   meeting_history, action_vector)
    out = jax.block_until_ready(out)

    assert out.shape == (B, OUT_CHANNEL)
    assert out.dtype == jnp.float32
    assert bool(jnp.all(jnp.isfinite(out)))
    print("KERNEL_OK")
</pallas_src>

<mosaic_0001>
module attributes {stable_mosaic.version = 11 : i64} {
  func.func @_inv_sales_critic_kernel(%arg0: memref<2x16x8xf32, #tpu.memory_space<vmem>>, %arg1: memref<2x8x6xf32, #tpu.memory_space<vmem>>, %arg2: memref<2x8x4xf32, #tpu.memory_space<vmem>>, %arg3: memref<2x5xf32, #tpu.memory_space<vmem>>, %arg4: memref<408x128xf32, #tpu.memory_space<vmem>>, %arg5: memref<2x1xf32, #tpu.memory_space<vmem>>) attributes {dimension_semantics = [], scalar_prefetch = 0 : i64, scratch_operands = 0 : i64, tpu.core_type = #tpu.core_type<tc>} {
    %cst = arith.constant 0.000000e+00 : f32
    %0 = vector.broadcast %cst : f32 to vector<2x8xf32>
    %c0 = arith.constant 0 : index
    %c0_0 = arith.constant 0 : index
    %c0_1 = arith.constant 0 : index
    %1 = vector.load %arg0[%c0, %c0_0, %c0_1] : memref<2x16x8xf32, #tpu.memory_space<vmem>>, vector<1x16x8xf32>
    %2 = vector.shape_cast %1 : vector<1x16x8xf32> to vector<16x8xf32>
    %3 = tpu.concatenate %0, %2, %0 in 0 : vector<2x8xf32>, vector<16x8xf32>, vector<2x8xf32> -> vector<20x8xf32>
    %c1 = arith.constant 1 : index
    %c0_2 = arith.constant 0 : index
    %c0_3 = arith.constant 0 : index
    %4 = vector.load %arg0[%c1, %c0_2, %c0_3] : memref<2x16x8xf32, #tpu.memory_space<vmem>>, vector<1x16x8xf32>
    %5 = vector.shape_cast %4 : vector<1x16x8xf32> to vector<16x8xf32>
    %6 = tpu.concatenate %0, %5, %0 in 0 : vector<2x8xf32>, vector<16x8xf32>, vector<2x8xf32> -> vector<20x8xf32>
    %7 = vector.extract_strided_slice %3 {offsets = [0, 0], sizes = [18, 8], strides = [1, 1]} : vector<20x8xf32> to vector<18x8xf32>
    %8 = vector.extract_strided_slice %3 {offsets = [1, 0], sizes = [18, 8], strides = [1, 1]} : vector<20x8xf32> to vector<18x8xf32>
    %9 = vector.extract_strided_slice %3 {offsets = [2, 0], sizes = [18, 8], strides = [1, 1]} : vector<20x8xf32> to vector<18x8xf32>
    %10 = tpu.concatenate %7, %8, %9 in 1 : vector<18x8xf32>, vector<18x8xf32>, vector<18x8xf32> -> vector<18x24xf32>
    %11 = vector.extract_strided_slice %6 {offsets = [0, 0], sizes = [18, 8], strides = [1, 1]} : vector<20x8xf32> to vector<18x8xf32>
    %12 = vector.extract_strided_slice %6 {offsets = [1, 0], sizes = [18, 8], strides = [1, 1]} : vector<20x8xf32> to vector<18x8xf32>
    %13 = vector.extract_strided_slice %6 {offsets = [2, 0], sizes = [18, 8], strides = [1, 1]} : vector<20x8xf32> to vector<18x8xf32>
    %14 = tpu.concatenate %11, %12, %13 in 1 : vector<18x8xf32>, vector<18x8xf32>, vector<18x8xf32> -> vector<18x24xf32>
    %15 = tpu.concatenate %10, %14 in 0 : vector<18x24xf32>, vector<18x24xf32> -> vector<36x24xf32>
    %c0_4 = arith.constant 0 : index
    %c0_5 = arith.constant 0 : index
    %16 = vector.load %arg4[%c0_4, %c0_5] : memref<408x128xf32, #tpu.memory_space<vmem>>, vector<24x4xf32>
    %cst_6 = arith.constant dense<0.000000e+00> : vector<36x4xf32>
    %17 = tpu.matmul %15, %16, %cst_6 {dimension_numbers = #tpu.dot_dimension_numbers<[1], [0], [0], [1], [0, 0, 1, 1], [], []>} : vector<36x24xf32>, vector<24x4xf32>, vector<36x4xf32> -> vector<36x4xf32>
    %c24 = arith.constant 24 : index
    %c0_7 = arith.constant 0 : index
    %18 = vector.load %arg4[%c24, %c0_7] : memref<408x128xf32, #tpu.memory_space<vmem>>, vector<1x4xf32>
    %19 = vector.broadcast %18 : vector<1x4xf32> to vector<36x4xf32>
    %20 = arith.addf %17, %19 : vector<36x4xf32>
    %cst_8 = arith.constant 0.000000e+00 : f32
    %21 = vector.broadcast %cst_8 : f32 to vector<36x4xf32>
    %22 = arith.maximumf %20, %21 : vector<36x4xf32>
    %23 = vector.extract_strided_slice %22 {offsets = [0, 0], sizes = [18, 4], strides = [1, 1]} : vector<36x4xf32> to vector<18x4xf32>
    %24 = vector.extract_strided_slice %22 {offsets = [18, 0], sizes = [18, 4], strides = [1, 1]} : vector<36x4xf32> to vector<18x4xf32>
    %25 = vector.extract_strided_slice %23 {offsets = [0, 0], sizes = [13, 4], strides = [1, 1]} : vector<18x4xf32> to vector<13x4xf32>
    %26 = vector.extract_strided_slice %23 {offsets = [1, 0], sizes = [13, 4], strides = [1, 1]} : vector<18x4xf32> to vector<13x4xf32>
    %27 = vector.extract_strided_slice %23 {offsets = [2, 0], sizes = [13, 4], strides = [1, 1]} : vector<18x4xf32> to vector<13x4xf32>
    %28 = vector.extract_strided_slice %23 {offsets = [3, 0], sizes = [13, 4], strides = [1, 1]} : vector<18x4xf32> to vector<13x4xf32>
    %29 = vector.extract_strided_slice %23 {offsets = [4, 0], sizes = [13, 4], strides = [1, 1]} : vector<18x4xf32> to vector<13x4xf32>
    %30 = vector.extract_strided_slice %23 {offsets = [5, 0], sizes = [13, 4], strides = [1, 1]} : vector<18x4xf32> to vector<13x4xf32>
    %31 = tpu.concatenate %25, %26, %27, %28, %29, %30 in 1 : vector<13x4xf32>, vector<13x4xf32>, vector<13x4xf32>, vector<13x4xf32>, vector<13x4xf32>, vector<13x4xf32> -> vector<13x24xf32>
    %32 = vector.extract_strided_slice %24 {offsets = [0, 0], sizes = [13, 4], strides = [1, 1]} : vector<18x4xf32> to vector<13x4xf32>
    %33 = vector.extract_strided_slice %24 {offsets = [1, 0], sizes = [13, 4], strides = [1, 1]} : vector<18x4xf32> to vector<13x4xf32>
    %34 = vector.extract_strided_slice %24 {offsets = [2, 0], sizes = [13, 4], strides = [1, 1]} : vector<18x4xf32> to vector<13x4xf32>
    %35 = vector.extract_strided_slice %24 {offsets = [3, 0], sizes = [13, 4], strides = [1, 1]} : vector<18x4xf32> to vector<13x4xf32>
    %36 = vector.extract_strided_slice %24 {offsets = [4, 0], sizes = [13, 4], strides = [1, 1]} : vector<18x4xf32> to vector<13x4xf32>
    %37 = vector.extract_strided_slice %24 {offsets = [5, 0], sizes = [13, 4], strides = [1, 1]} : vector<18x4xf32> to vector<13x4xf32>
    %38 = tpu.concatenate %32, %33, %34, %35, %36, %37 in 1 : vector<13x4xf32>, vector<13x4xf32>, vector<13x4xf32>, vector<13x4xf32>, vector<13x4xf32>, vector<13x4xf32> -> vector<13x24xf32>
    %39 = tpu.concatenate %31, %38 in 0 : vector<13x24xf32>, vector<13x24xf32> -> vector<26x24xf32>
    %c32 = arith.constant 32 : index
    %c0_9 = arith.constant 0 : index
    %40 = vector.load %arg4[%c32, %c0_9] : memref<408x128xf32, #tpu.memory_space<vmem>>, vector<24x2xf32>
    %cst_10 = arith.constant dense<0.000000e+00> : vector<26x2xf32>
    %41 = tpu.matmul %39, %40, %cst_10 {dimension_numbers = #tpu.dot_dimension_numbers<[1], [0], [0], [1], [0, 0, 1, 1], [], []>} : vector<26x24xf32>, vector<24x2xf32>, vector<26x2xf32> -> vector<26x2xf32>
    %c56 = arith.constant 56 : index
    %c0_11 = arith.constant 0 : index
    %42 = vector.load %arg4[%c56, %c0_11] : memref<408x128xf32, #tpu.memory_space<vmem>>, vector<1x2xf32>
    %43 = vector.broadcast %42 : vector<1x2xf32> to vector<26x2xf32>
    %44 = arith.addf %41, %43 : vector<26x2xf32>
    %cst_12 = arith.constant 0.000000e+00 : f32
    %45 = vector.broadcast %cst_12 : f32 to vector<26x2xf32>
    %46 = arith.maximumf %44, %45 : vector<26x2xf32>
    %47 = vector.extract_strided_slice %46 {offsets = [0, 0], sizes = [13, 2], strides = [1, 1]} : vector<26x2xf32> to vector<13x2xf32>
    %48 = vector.extract_strided_slice %46 {offsets = [13, 0], sizes = [13, 2], strides = [1, 1]} : vector<26x2xf32> to vector<13x2xf32>
    %49 = vector.extract_strided_slice %47 {offsets = [0, 0], sizes = [11, 2], strides = [1, 1]} : vector<13x2xf32> to vector<11x2xf32>
    %50 = vector.extract_strided_slice %47 {offsets = [1, 0], sizes = [11, 2], strides = [1, 1]} : vector<13x2xf32> to vector<11x2xf32>
    %51 = vector.extract_strided_slice %47 {offsets = [2, 0], sizes = [11, 2], strides = [1, 1]} : vector<13x2xf32> to vector<11x2xf32>
    %52 = tpu.concatenate %49, %50, %51 in 1 : vector<11x2xf32>, vector<11x2xf32>, vector<11x2xf32> -> vector<11x6xf32>
    %53 = vector.extract_strided_slice %48 {offsets = [0, 0], sizes = [11, 2], strides = [1, 1]} : vector<13x2xf32> to vector<11x2xf32>
    %54 = vector.extract_strided_slice %48 {offsets = [1, 0], sizes = [11, 2], strides = [1, 1]} : vector<13x2xf32> to vector<11x2xf32>
    %55 = vector.extract_strided_slice %48 {offsets = [2, 0], sizes = [11, 2], strides = [1, 1]} : vector<13x2xf32> to vector<11x2xf32>
    %56 = tpu.concatenate %53, %54, %55 in 1 : vector<11x2xf32>, vector<11x2xf32>, vector<11x2xf32> -> vector<11x6xf32>
    %57 = tpu.concatenate %52, %56 in 0 : vector<11x6xf32>, vector<11x6xf32> -> vector<22x6xf32>
    %c64 = arith.constant 64 : index
    %c0_13 = arith.constant 0 : index
    %58 = vector.load %arg4[%c64, %c0_13] : memref<408x128xf32, #tpu.memory_space<vmem>>, vector<6x10xf32>
    %cst_14 = arith.constant dense<0.000000e+00> : vector<22x10xf32>
    %59 = tpu.matmul %57, %58, %cst_14 {dimension_numbers = #tpu.dot_dimension_numbers<[1], [0], [0], [1], [0, 0, 1, 1], [], []>} : vector<22x6xf32>, vector<6x10xf32>, vector<22x10xf32> -> vector<22x10xf32>
    %c72 = arith.constant 72 : index
    %c0_15 = arith.constant 0 : index
    %60 = vector.load %arg4[%c72, %c0_15] : memref<408x128xf32, #tpu.memory_space<vmem>>, vector<1x10xf32>
    %61 = vector.broadcast %60 : vector<1x10xf32> to vector<22x10xf32>
    %62 = arith.addf %59, %61 : vector<22x10xf32>
    %cst_16 = arith.constant 0.000000e+00 : f32
    %63 = vector.broadcast %cst_16 : f32 to vector<22x10xf32>
    %64 = arith.maximumf %62, %63 : vector<22x10xf32>
    %65 = vector.extract_strided_slice %64 {offsets = [0, 0], sizes = [11, 10], strides = [1, 1]} : vector<22x10xf32> to vector<11x10xf32>
    %66 = vector.extract_strided_slice %65 {offsets = [0, 0], sizes = [1, 10], strides = [1, 1]} : vector<11x10xf32> to vector<1x10xf32>
    %67 = vector.extract_strided_slice %65 {offsets = [1, 0], sizes = [1, 10], strides = [1, 1]} : vector<11x10xf32> to vector<1x10xf32>
    %68 = vector.extract_strided_slice %65 {offsets = [2, 0], sizes = [1, 10], strides = [1, 1]} : vector<11x10xf32> to vector<1x10xf32>
    %69 = vector.extract_strided_slice %65 {offsets = [3, 0], sizes = [1, 10], strides = [1, 1]} : vector<11x10xf32> to vector<1x10xf32>
    %70 = vector.extract_strided_slice %65 {offsets = [4, 0], sizes = [1, 10], strides = [1, 1]} : vector<11x10xf32> to vector<1x10xf32>
    %71 = vector.extract_strided_slice %65 {offsets = [5, 0], sizes = [1, 10], strides = [1, 1]} : vector<11x10xf32> to vector<1x10xf32>
    %72 = vector.extract_strided_slice %65 {offsets = [6, 0], sizes = [1, 10], strides = [1, 1]} : vector<11x10xf32> to vector<1x10xf32>
    %73 = vector.extract_strided_slice %65 {offsets = [7, 0], sizes = [1, 10], strides = [1, 1]} : vector<11x10xf32> to vector<1x10xf32>
    %74 = vector.extract_strided_slice %65 {offsets = [8, 0], sizes = [1, 10], strides = [1, 1]} : vector<11x10xf32> to vector<1x10xf32>
    %75 = vector.extract_strided_slice %65 {offsets = [9, 0], sizes = [1, 10], strides = [1, 1]} : vector<11x10xf32> to vector<1x10xf32>
    %76 = vector.extract_strided_slice %65 {offsets = [10, 0], sizes = [1, 10], strides = [1, 1]} : vector<11x10xf32> to vector<1x10xf32>
    %77 = tpu.concatenate %66, %67, %68, %69, %70, %71, %72, %73, %74, %75, %76 in 1 : vector<1x10xf32>, vector<1x10xf32>, vector<1x10xf32>, vector<1x10xf32>, vector<1x10xf32>, vector<1x10xf32>, vector<1x10xf32>, vector<1x10xf32>, vector<1x10xf32>, vector<1x10xf32>, vector<1x10xf32> -> vector<1x110xf32>
    %78 = vector.extract_strided_slice %64 {offsets = [11, 0], sizes = [11, 10], strides = [1, 1]} : vector<22x10xf32> to vector<11x10xf32>
    %79 = vector.extract_strided_slice %78 {offsets = [0, 0], sizes = [1, 10], strides = [1, 1]} : vector<11x10xf32> to vector<1x10xf32>
    %80 = vector.extract_strided_slice %78 {offsets = [1, 0], sizes = [1, 10], strides = [1, 1]} : vector<11x10xf32> to vector<1x10xf32>
    %81 = vector.extract_strided_slice %78 {offsets = [2, 0], sizes = [1, 10], strides = [1, 1]} : vector<11x10xf32> to vector<1x10xf32>
    %82 = vector.extract_strided_slice %78 {offsets = [3, 0], sizes = [1, 10], strides = [1, 1]} : vector<11x10xf32> to vector<1x10xf32>
    %83 = vector.extract_strided_slice %78 {offsets = [4, 0], sizes = [1, 10], strides = [1, 1]} : vector<11x10xf32> to vector<1x10xf32>
    %84 = vector.extract_strided_slice %78 {offsets = [5, 0], sizes = [1, 10], strides = [1, 1]} : vector<11x10xf32> to vector<1x10xf32>
    %85 = vector.extract_strided_slice %78 {offsets = [6, 0], sizes = [1, 10], strides = [1, 1]} : vector<11x10xf32> to vector<1x10xf32>
    %86 = vector.extract_strided_slice %78 {offsets = [7, 0], sizes = [1, 10], strides = [1, 1]} : vector<11x10xf32> to vector<1x10xf32>
    %87 = vector.extract_strided_slice %78 {offsets = [8, 0], sizes = [1, 10], strides = [1, 1]} : vector<11x10xf32> to vector<1x10xf32>
    %88 = vector.extract_strided_slice %78 {offsets = [9, 0], sizes = [1, 10], strides = [1, 1]} : vector<11x10xf32> to vector<1x10xf32>
    %89 = vector.extract_strided_slice %78 {offsets = [10, 0], sizes = [1, 10], strides = [1, 1]} : vector<11x10xf32> to vector<1x10xf32>
    %90 = tpu.concatenate %79, %80, %81, %82, %83, %84, %85, %86, %87, %88, %89 in 1 : vector<1x10xf32>, vector<1x10xf32>, vector<1x10xf32>, vector<1x10xf32>, vector<1x10xf32>, vector<1x10xf32>, vector<1x10xf32>, vector<1x10xf32>, vector<1x10xf32>, vector<1x10xf32>, vector<1x10xf32> -> vector<1x110xf32>
    %91 = tpu.concatenate %77, %90 in 0 : vector<1x110xf32>, vector<1x110xf32> -> vector<2x110xf32>
    %c0_17 = arith.constant 0 : index
    %c0_18 = arith.constant 0 : index
    %c0_19 = arith.constant 0 : index
    %92 = vector.load %arg1[%c0_17, %c0_18, %c0_19] : memref<2x8x6xf32, #tpu.memory_space<vmem>>, vector<1x8x6xf32>
    %93 = vector.shape_cast %92 : vector<1x8x6xf32> to vector<8x6xf32>
    %c0_20 = arith.constant 0 : index
    %c0_21 = arith.constant 0 : index
    %c0_22 = arith.constant 0 : index
    %94 = vector.load %arg2[%c0_20, %c0_21, %c0_22] : memref<2x8x4xf32, #tpu.memory_space<vmem>>, vector<1x8x4xf32>
    %95 = vector.shape_cast %94 : vector<1x8x4xf32> to vector<8x4xf32>
    %96 = tpu.concatenate %93, %95 in 1 : vector<8x6xf32>, vector<8x4xf32> -> vector<8x10xf32>
    %c1_23 = arith.constant 1 : index
    %c0_24 = arith.constant 0 : index
    %c0_25 = arith.constant 0 : index
    %97 = vector.load %arg1[%c1_23, %c0_24, %c0_25] : memref<2x8x6xf32, #tpu.memory_space<vmem>>, vector<1x8x6xf32>
    %98 = vector.shape_cast %97 : vector<1x8x6xf32> to vector<8x6xf32>
    %c1_26 = arith.constant 1 : index
    %c0_27 = arith.constant 0 : index
    %c0_28 = arith.constant 0 : index
    %99 = vector.load %arg2[%c1_26, %c0_27, %c0_28] : memref<2x8x4xf32, #tpu.memory_space<vmem>>, vector<1x8x4xf32>
    %100 = vector.shape_cast %99 : vector<1x8x4xf32> to vector<8x4xf32>
    %101 = tpu.concatenate %98, %100 in 1 : vector<8x6xf32>, vector<8x4xf32> -> vector<8x10xf32>
    %102 = tpu.concatenate %96, %101 in 0 : vector<8x10xf32>, vector<8x10xf32> -> vector<16x10xf32>
    %c80 = arith.constant 80 : index
    %c0_29 = arith.constant 0 : index
    %103 = vector.load %arg4[%c80, %c0_29] : memref<408x128xf32, #tpu.memory_space<vmem>>, vector<10x45xf32>
    %cst_30 = arith.constant dense<0.000000e+00> : vector<16x45xf32>
    %104 = tpu.matmul %102, %103, %cst_30 {dimension_numbers = #tpu.dot_dimension_numbers<[1], [0], [0], [1], [0, 0, 1, 1], [], []>} : vector<16x10xf32>, vector<10x45xf32>, vector<16x45xf32> -> vector<16x45xf32>
    %c96 = arith.constant 96 : index
    %c0_31 = arith.constant 0 : index
    %105 = vector.load %arg4[%c96, %c0_31] : memref<408x128xf32, #tpu.memory_space<vmem>>, vector<1x45xf32>
    %106 = vector.broadcast %105 : vector<1x45xf32> to vector<16x45xf32>
    %107 = arith.addf %104, %106 : vector<16x45xf32>
    %c104 = arith.constant 104 : index
    %c0_32 = arith.constant 0 : index
    %108 = vector.load %arg4[%c104, %c0_32] : memref<408x128xf32, #tpu.memory_space<vmem>>, vector<15x45xf32>
    %c120 = arith.constant 120 : index
    %c0_33 = arith.constant 0 : index
    %109 = vector.load %arg4[%c120, %c0_33] : memref<408x128xf32, #tpu.memory_space<vmem>>, vector<1x45xf32>
    %cst_34 = arith.constant 0.000000e+00 : f32
    %110 = vector.broadcast %cst_34 : f32 to vector<2x15xf32>
    %111 = vector.extract_strided_slice %107 {offsets = [0, 0], sizes = [1, 45], strides = [1, 1]} : vector<16x45xf32> to vector<1x45xf32>
    %112 = vector.extract_strided_slice %107 {offsets = [8, 0], sizes = [1, 45], strides = [1, 1]} : vector<16x45xf32> to vector<1x45xf32>
    %113 = tpu.concatenate %111, %112 in 0 : vector<1x45xf32>, vector<1x45xf32> -> vector<2x45xf32>
    %cst_35 = arith.constant dense<0.000000e+00> : vector<2x45xf32>
    %114 = tpu.matmul %110, %108, %cst_35 {dimension_numbers = #tpu.dot_dimension_numbers<[1], [0], [0], [1], [0, 0, 1, 1], [], []>} : vector<2x15xf32>, vector<15x45xf32>, vector<2x45xf32> -> vector<2x45xf32>
    %115 = vector.broadcast %109 : vector<1x45xf32> to vector<2x45xf32>
    %116 = arith.addf %114, %115 : vector<2x45xf32>
    %117 = vector.extract_strided_slice %113 {offsets = [0, 0], sizes = [2, 15], strides = [1, 1]} : vector<2x45xf32> to vector<2x15xf32>
    %118 = vector.extract_strided_slice %116 {offsets = [0, 0], sizes = [2, 15], strides = [1, 1]} : vector<2x45xf32> to vector<2x15xf32>
    %119 = arith.addf %117, %118 : vector<2x15xf32>
    %120 = arith.negf %119 : vector<2x15xf32>
    %121 = math.exp %120 : vector<2x15xf32>
    %cst_36 = arith.constant 1.000000e+00 : f32
    %122 = vector.broadcast %cst_36 : f32 to vector<2x15xf32>
    %123 = arith.addf %122, %121 : vector<2x15xf32>
    %124 = arith.divf %122, %123 : vector<2x15xf32>
    %125 = vector.extract_strided_slice %113 {offsets = [0, 15], sizes = [2, 15], strides = [1, 1]} : vector<2x45xf32> to vector<2x15xf32>
    %126 = vector.extract_strided_slice %116 {offsets = [0, 15], sizes = [2, 15], strides = [1, 1]} : vector<2x45xf32> to vector<2x15xf32>
    %127 = arith.addf %125, %126 : vector<2x15xf32>
    %128 = arith.negf %127 : vector<2x15xf32>
    %129 = math.exp %128 : vector<2x15xf32>
    %cst_37 = arith.constant 1.000000e+00 : f32
    %130 = vector.broadcast %cst_37 : f32 to vector<2x15xf32>
    %131 = arith.addf %130, %129 : vector<2x15xf32>
    %132 = arith.divf %130, %131 : vector<2x15xf32>
    %133 = vector.extract_strided_slice %113 {offsets = [0, 30], sizes = [2, 15], strides = [1, 1]} : vector<2x45xf32> to vector<2x15xf32>
    %134 = vector.extract_strided_slice %116 {offsets = [0, 30], sizes = [2, 15], strides = [1, 1]} : vector<2x45xf32> to vector<2x15xf32>
    %135 = arith.mulf %124, %134 : vector<2x15xf32>
    %136 = arith.addf %133, %135 : vector<2x15xf32>
    %137 = math.tanh %136 : vector<2x15xf32>
    %cst_38 = arith.constant 1.000000e+00 : f32
    %138 = vector.broadcast %cst_38 : f32 to vector<2x15xf32>
    %139 = arith.subf %138, %132 : vector<2x15xf32>
    %140 = arith.mulf %139, %137 : vector<2x15xf32>
    %141 = arith.mulf %132, %110 : vector<2x15xf32>
    %142 = arith.addf %140, %141 : vector<2x15xf32>
    %143 = vector.extract_strided_slice %107 {offsets = [1, 0], sizes = [1, 45], strides = [1, 1]} : vector<16x45xf32> to vector<1x45xf32>
    %144 = vector.extract_strided_slice %107 {offsets = [9, 0], sizes = [1, 45], strides = [1, 1]} : vector<16x45xf32> to vector<1x45xf32>
    %145 = tpu.concatenate %143, %144 in 0 : vector<1x45xf32>, vector<1x45xf32> -> vector<2x45xf32>
    %cst_39 = arith.constant dense<0.000000e+00> : vector<2x45xf32>
    %146 = tpu.matmul %142, %108, %cst_39 {dimension_numbers = #tpu.dot_dimension_numbers<[1], [0], [0], [1], [0, 0, 1, 1], [], []>} : vector<2x15xf32>, vector<15x45xf32>, vector<2x45xf32> -> vector<2x45xf32>
    %147 = vector.broadcast %109 : vector<1x45xf32> to vector<2x45xf32>
    %148 = arith.addf %146, %147 : vector<2x45xf32>
    %149 = vector.extract_strided_slice %145 {offsets = [0, 0], sizes = [2, 15], strides = [1, 1]} : vector<2x45xf32> to vector<2x15xf32>
    %150 = vector.extract_strided_slice %148 {offsets = [0, 0], sizes = [2, 15], strides = [1, 1]} : vector<2x45xf32> to vector<2x15xf32>
    %151 = arith.addf %149, %150 : vector<2x15xf32>
    %152 = arith.negf %151 : vector<2x15xf32>
    %153 = math.exp %152 : vector<2x15xf32>
    %cst_40 = arith.constant 1.000000e+00 : f32
    %154 = vector.broadcast %cst_40 : f32 to vector<2x15xf32>
    %155 = arith.addf %154, %153 : vector<2x15xf32>
    %156 = arith.divf %154, %155 : vector<2x15xf32>
    %157 = vector.extract_strided_slice %145 {offsets = [0, 15], sizes = [2, 15], strides = [1, 1]} : vector<2x45xf32> to vector<2x15xf32>
    %158 = vector.extract_strided_slice %148 {offsets = [0, 15], sizes = [2, 15], strides = [1, 1]} : vector<2x45xf32> to vector<2x15xf32>
    %159 = arith.addf %157, %158 : vector<2x15xf32>
    %160 = arith.negf %159 : vector<2x15xf32>
    %161 = math.exp %160 : vector<2x15xf32>
    %cst_41 = arith.constant 1.000000e+00 : f32
    %162 = vector.broadcast %cst_41 : f32 to vector<2x15xf32>
    %163 = arith.addf %162, %161 : vector<2x15xf32>
    %164 = arith.divf %162, %163 : vector<2x15xf32>
    %165 = vector.extract_strided_slice %145 {offsets = [0, 30], sizes = [2, 15], strides = [1, 1]} : vector<2x45xf32> to vector<2x15xf32>
    %166 = vector.extract_strided_slice %148 {offsets = [0, 30], sizes = [2, 15], strides = [1, 1]} : vector<2x45xf32> to vector<2x15xf32>
    %167 = arith.mulf %156, %166 : vector<2x15xf32>
    %168 = arith.addf %165, %167 : vector<2x15xf32>
    %169 = math.tanh %168 : vector<2x15xf32>
    %cst_42 = arith.constant 1.000000e+00 : f32
    %170 = vector.broadcast %cst_42 : f32 to vector<2x15xf32>
    %171 = arith.subf %170, %164 : vector<2x15xf32>
    %172 = arith.mulf %171, %169 : vector<2x15xf32>
    %173 = arith.mulf %164, %142 : vector<2x15xf32>
    %174 = arith.addf %172, %173 : vector<2x15xf32>
    %175 = vector.extract_strided_slice %107 {offsets = [2, 0], sizes = [1, 45], strides = [1, 1]} : vector<16x45xf32> to vector<1x45xf32>
    %176 = vector.extract_strided_slice %107 {offsets = [10, 0], sizes = [1, 45], strides = [1, 1]} : vector<16x45xf32> to vector<1x45xf32>
    %177 = tpu.concatenate %175, %176 in 0 : vector<1x45xf32>, vector<1x45xf32> -> vector<2x45xf32>
    %cst_43 = arith.constant dense<0.000000e+00> : vector<2x45xf32>
    %178 = tpu.matmul %174, %108, %cst_43 {dimension_numbers = #tpu.dot_dimension_numbers<[1], [0], [0], [1], [0, 0, 1, 1], [], []>} : vector<2x15xf32>, vector<15x45xf32>, vector<2x45xf32> -> vector<2x45xf32>
    %179 = vector.broadcast %109 : vector<1x45xf32> to vector<2x45xf32>
    %180 = arith.addf %178, %179 : vector<2x45xf32>
    %181 = vector.extract_strided_slice %177 {offsets = [0, 0], sizes = [2, 15], strides = [1, 1]} : vector<2x45xf32> to vector<2x15xf32>
    %182 = vector.extract_strided_slice %180 {offsets = [0, 0], sizes = [2, 15], strides = [1, 1]} : vector<2x45xf32> to vector<2x15xf32>
    %183 = arith.addf %181, %182 : vector<2x15xf32>
    %184 = arith.negf %183 : vector<2x15xf32>
    %185 = math.exp %184 : vector<2x15xf32>
    %cst_44 = arith.constant 1.000000e+00 : f32
    %186 = vector.broadcast %cst_44 : f32 to vector<2x15xf32>
    %187 = arith.addf %186, %185 : vector<2x15xf32>
    %188 = arith.divf %186, %187 : vector<2x15xf32>
    %189 = vector.extract_strided_slice %177 {offsets = [0, 15], sizes = [2, 15], strides = [1, 1]} : vector<2x45xf32> to vector<2x15xf32>
    %190 = vector.extract_strided_slice %180 {offsets = [0, 15], sizes = [2, 15], strides = [1, 1]} : vector<2x45xf32> to vector<2x15xf32>
    %191 = arith.addf %189, %190 : vector<2x15xf32>
    %192 = arith.negf %191 : vector<2x15xf32>
    %193 = math.exp %192 : vector<2x15xf32>
    %cst_45 = arith.constant 1.000000e+00 : f32
    %194 = vector.broadcast %cst_45 : f32 to vector<2x15xf32>
    %195 = arith.addf %194, %193 : vector<2x15xf32>
    %196 = arith.divf %194, %195 : vector<2x15xf32>
    %197 = vector.extract_strided_slice %177 {offsets = [0, 30], sizes = [2, 15], strides = [1, 1]} : vector<2x45xf32> to vector<2x15xf32>
    %198 = vector.extract_strided_slice %180 {offsets = [0, 30], sizes = [2, 15], strides = [1, 1]} : vector<2x45xf32> to vector<2x15xf32>
    %199 = arith.mulf %188, %198 : vector<2x15xf32>
    %200 = arith.addf %197, %199 : vector<2x15xf32>
    %201 = math.tanh %200 : vector<2x15xf32>
    %cst_46 = arith.constant 1.000000e+00 : f32
    %202 = vector.broadcast %cst_46 : f32 to vector<2x15xf32>
    %203 = arith.subf %202, %196 : vector<2x15xf32>
    %204 = arith.mulf %203, %201 : vector<2x15xf32>
    %205 = arith.mulf %196, %174 : vector<2x15xf32>
    %206 = arith.addf %204, %205 : vector<2x15xf32>
    %207 = vector.extract_strided_slice %107 {offsets = [3, 0], sizes = [1, 45], strides = [1, 1]} : vector<16x45xf32> to vector<1x45xf32>
    %208 = vector.extract_strided_slice %107 {offsets = [11, 0], sizes = [1, 45], strides = [1, 1]} : vector<16x45xf32> to vector<1x45xf32>
    %209 = tpu.concatenate %207, %208 in 0 : vector<1x45xf32>, vector<1x45xf32> -> vector<2x45xf32>
    %cst_47 = arith.constant dense<0.000000e+00> : vector<2x45xf32>
    %210 = tpu.matmul %206, %108, %cst_47 {dimension_numbers = #tpu.dot_dimension_numbers<[1], [0], [0], [1], [0, 0, 1, 1], [], []>} : vector<2x15xf32>, vector<15x45xf32>, vector<2x45xf32> -> vector<2x45xf32>
    %211 = vector.broadcast %109 : vector<1x45xf32> to vector<2x45xf32>
    %212 = arith.addf %210, %211 : vector<2x45xf32>
    %213 = vector.extract_strided_slice %209 {offsets = [0, 0], sizes = [2, 15], strides = [1, 1]} : vector<2x45xf32> to vector<2x15xf32>
    %214 = vector.extract_strided_slice %212 {offsets = [0, 0], sizes = [2, 15], strides = [1, 1]} : vector<2x45xf32> to vector<2x15xf32>
    %215 = arith.addf %213, %214 : vector<2x15xf32>
    %216 = arith.negf %215 : vector<2x15xf32>
    %217 = math.exp %216 : vector<2x15xf32>
    %cst_48 = arith.constant 1.000000e+00 : f32
    %218 = vector.broadcast %cst_48 : f32 to vector<2x15xf32>
    %219 = arith.addf %218, %217 : vector<2x15xf32>
    %220 = arith.divf %218, %219 : vector<2x15xf32>
    %221 = vector.extract_strided_slice %209 {offsets = [0, 15], sizes = [2, 15], strides = [1, 1]} : vector<2x45xf32> to vector<2x15xf32>
    %222 = vector.extract_strided_slice %212 {offsets = [0, 15], sizes = [2, 15], strides = [1, 1]} : vector<2x45xf32> to vector<2x15xf32>
    %223 = arith.addf %221, %222 : vector<2x15xf32>
    %224 = arith.negf %223 : vector<2x15xf32>
    %225 = math.exp %224 : vector<2x15xf32>
    %cst_49 = arith.constant 1.000000e+00 : f32
    %226 = vector.broadcast %cst_49 : f32 to vector<2x15xf32>
    %227 = arith.addf %226, %225 : vector<2x15xf32>
    %228 = arith.divf %226, %227 : vector<2x15xf32>
    %229 = vector.extract_strided_slice %209 {offsets = [0, 30], sizes = [2, 15], strides = [1, 1]} : vector<2x45xf32> to vector<2x15xf32>
    %230 = vector.extract_strided_slice %212 {offsets = [0, 30], sizes = [2, 15], strides = [1, 1]} : vector<2x45xf32> to vector<2x15xf32>
    %231 = arith.mulf %220, %230 : vector<2x15xf32>
    %232 = arith.addf %229, %231 : vector<2x15xf32>
    %233 = math.tanh %232 : vector<2x15xf32>
    %cst_50 = arith.constant 1.000000e+00 : f32
    %234 = vector.broadcast %cst_50 : f32 to vector<2x15xf32>
    %235 = arith.subf %234, %228 : vector<2x15xf32>
    %236 = arith.mulf %235, %233 : vector<2x15xf32>
    %237 = arith.mulf %228, %206 : vector<2x15xf32>
    %238 = arith.addf %236, %237 : vector<2x15xf32>
    %239 = vector.extract_strided_slice %107 {offsets = [4, 0], sizes = [1, 45], strides = [1, 1]} : vector<16x45xf32> to vector<1x45xf32>
    %240 = vector.extract_strided_slice %107 {offsets = [12, 0], sizes = [1, 45], strides = [1, 1]} : vector<16x45xf32> to vector<1x45xf32>
    %241 = tpu.concatenate %239, %240 in 0 : vector<1x45xf32>, vector<1x45xf32> -> vector<2x45xf32>
    %cst_51 = arith.constant dense<0.000000e+00> : vector<2x45xf32>
    %242 = tpu.matmul %238, %108, %cst_51 {dimension_numbers = #tpu.dot_dimension_numbers<[1], [0], [0], [1], [0, 0, 1, 1], [], []>} : vector<2x15xf32>, vector<15x45xf32>, vector<2x45xf32> -> vector<2x45xf32>
    %243 = vector.broadcast %109 : vector<1x45xf32> to vector<2x45xf32>
    %244 = arith.addf %242, %243 : vector<2x45xf32>
    %245 = vector.extract_strided_slice %241 {offsets = [0, 0], sizes = [2, 15], strides = [1, 1]} : vector<2x45xf32> to vector<2x15xf32>
    %246 = vector.extract_strided_slice %244 {offsets = [0, 0], sizes = [2, 15], strides = [1, 1]} : vector<2x45xf32> to vector<2x15xf32>
    %247 = arith.addf %245, %246 : vector<2x15xf32>
    %248 = arith.negf %247 : vector<2x15xf32>
    %249 = math.exp %248 : vector<2x15xf32>
    %cst_52 = arith.constant 1.000000e+00 : f32
    %250 = vector.broadcast %cst_52 : f32 to vector<2x15xf32>
    %251 = arith.addf %250, %249 : vector<2x15xf32>
    %252 = arith.divf %250, %251 : vector<2x15xf32>
    %253 = vector.extract_strided_slice %241 {offsets = [0, 15], sizes = [2, 15], strides = [1, 1]} : vector<2x45xf32> to vector<2x15xf32>
    %254 = vector.extract_strided_slice %244 {offsets = [0, 15], sizes = [2, 15], strides = [1, 1]} : vector<2x45xf32> to vector<2x15xf32>
    %255 = arith.addf %253, %254 : vector<2x15xf32>
    %256 = arith.negf %255 : vector<2x15xf32>
    %257 = math.exp %256 : vector<2x15xf32>
    %cst_53 = arith.constant 1.000000e+00 : f32
    %258 = vector.broadcast %cst_53 : f32 to vector<2x15xf32>
    %259 = arith.addf %258, %257 : vector<2x15xf32>
    %260 = arith.divf %258, %259 : vector<2x15xf32>
    %261 = vector.extract_strided_slice %241 {offsets = [0, 30], sizes = [2, 15], strides = [1, 1]} : vector<2x45xf32> to vector<2x15xf32>
    %262 = vector.extract_strided_slice %244 {offsets = [0, 30], sizes = [2, 15], strides = [1, 1]} : vector<2x45xf32> to vector<2x15xf32>
    %263 = arith.mulf %252, %262 : vector<2x15xf32>
    %264 = arith.addf %261, %263 : vector<2x15xf32>
    %265 = math.tanh %264 : vector<2x15xf32>
    %cst_54 = arith.constant 1.000000e+00 : f32
    %266 = vector.broadcast %cst_54 : f32 to vector<2x15xf32>
    %267 = arith.subf %266, %260 : vector<2x15xf32>
    %268 = arith.mulf %267, %265 : vector<2x15xf32>
    %269 = arith.mulf %260, %238 : vector<2x15xf32>
    %270 = arith.addf %268, %269 : vector<2x15xf32>
    %271 = vector.extract_strided_slice %107 {offsets = [5, 0], sizes = [1, 45], strides = [1, 1]} : vector<16x45xf32> to vector<1x45xf32>
    %272 = vector.extract_strided_slice %107 {offsets = [13, 0], sizes = [1, 45], strides = [1, 1]} : vector<16x45xf32> to vector<1x45xf32>
    %273 = tpu.concatenate %271, %272 in 0 : vector<1x45xf32>, vector<1x45xf32> -> vector<2x45xf32>
    %cst_55 = arith.constant dense<0.000000e+00> : vector<2x45xf32>
    %274 = tpu.matmul %270, %108, %cst_55 {dimension_numbers = #tpu.dot_dimension_numbers<[1], [0], [0], [1], [0, 0, 1, 1], [], []>} : vector<2x15xf32>, vector<15x45xf32>, vector<2x45xf32> -> vector<2x45xf32>
    %275 = vector.broadcast %109 : vector<1x45xf32> to vector<2x45xf32>
    %276 = arith.addf %274, %275 : vector<2x45xf32>
    %277 = vector.extract_strided_slice %273 {offsets = [0, 0], sizes = [2, 15], strides = [1, 1]} : vector<2x45xf32> to vector<2x15xf32>
    %278 = vector.extract_strided_slice %276 {offsets = [0, 0], sizes = [2, 15], strides = [1, 1]} : vector<2x45xf32> to vector<2x15xf32>
    %279 = arith.addf %277, %278 : vector<2x15xf32>
    %280 = arith.negf %279 : vector<2x15xf32>
    %281 = math.exp %280 : vector<2x15xf32>
    %cst_56 = arith.constant 1.000000e+00 : f32
    %282 = vector.broadcast %cst_56 : f32 to vector<2x15xf32>
    %283 = arith.addf %282, %281 : vector<2x15xf32>
    %284 = arith.divf %282, %283 : vector<2x15xf32>
    %285 = vector.extract_strided_slice %273 {offsets = [0, 15], sizes = [2, 15], strides = [1, 1]} : vector<2x45xf32> to vector<2x15xf32>
    %286 = vector.extract_strided_slice %276 {offsets = [0, 15], sizes = [2, 15], strides = [1, 1]} : vector<2x45xf32> to vector<2x15xf32>
    %287 = arith.addf %285, %286 : vector<2x15xf32>
    %288 = arith.negf %287 : vector<2x15xf32>
    %289 = math.exp %288 : vector<2x15xf32>
    %cst_57 = arith.constant 1.000000e+00 : f32
    %290 = vector.broadcast %cst_57 : f32 to vector<2x15xf32>
    %291 = arith.addf %290, %289 : vector<2x15xf32>
    %292 = arith.divf %290, %291 : vector<2x15xf32>
    %293 = vector.extract_strided_slice %273 {offsets = [0, 30], sizes = [2, 15], strides = [1, 1]} : vector<2x45xf32> to vector<2x15xf32>
    %294 = vector.extract_strided_slice %276 {offsets = [0, 30], sizes = [2, 15], strides = [1, 1]} : vector<2x45xf32> to vector<2x15xf32>
    %295 = arith.mulf %284, %294 : vector<2x15xf32>
    %296 = arith.addf %293, %295 : vector<2x15xf32>
    %297 = math.tanh %296 : vector<2x15xf32>
    %cst_58 = arith.constant 1.000000e+00 : f32
    %298 = vector.broadcast %cst_58 : f32 to vector<2x15xf32>
    %299 = arith.subf %298, %292 : vector<2x15xf32>
    %300 = arith.mulf %299, %297 : vector<2x15xf32>
    %301 = arith.mulf %292, %270 : vector<2x15xf32>
    %302 = arith.addf %300, %301 : vector<2x15xf32>
    %303 = vector.extract_strided_slice %107 {offsets = [6, 0], sizes = [1, 45], strides = [1, 1]} : vector<16x45xf32> to vector<1x45xf32>
    %304 = vector.extract_strided_slice %107 {offsets = [14, 0], sizes = [1, 45], strides = [1, 1]} : vector<16x45xf32> to vector<1x45xf32>
    %305 = tpu.concatenate %303, %304 in 0 : vector<1x45xf32>, vector<1x45xf32> -> vector<2x45xf32>
    %cst_59 = arith.constant dense<0.000000e+00> : vector<2x45xf32>
    %306 = tpu.matmul %302, %108, %cst_59 {dimension_numbers = #tpu.dot_dimension_numbers<[1], [0], [0], [1], [0, 0, 1, 1], [], []>} : vector<2x15xf32>, vector<15x45xf32>, vector<2x45xf32> -> vector<2x45xf32>
    %307 = vector.broadcast %109 : vector<1x45xf32> to vector<2x45xf32>
    %308 = arith.addf %306, %307 : vector<2x45xf32>
    %309 = vector.extract_strided_slice %305 {offsets = [0, 0], sizes = [2, 15], strides = [1, 1]} : vector<2x45xf32> to vector<2x15xf32>
    %310 = vector.extract_strided_slice %308 {offsets = [0, 0], sizes = [2, 15], strides = [1, 1]} : vector<2x45xf32> to vector<2x15xf32>
    %311 = arith.addf %309, %310 : vector<2x15xf32>
    %312 = arith.negf %311 : vector<2x15xf32>
    %313 = math.exp %312 : vector<2x15xf32>
    %cst_60 = arith.constant 1.000000e+00 : f32
    %314 = vector.broadcast %cst_60 : f32 to vector<2x15xf32>
    %315 = arith.addf %314, %313 : vector<2x15xf32>
    %316 = arith.divf %314, %315 : vector<2x15xf32>
    %317 = vector.extract_strided_slice %305 {offsets = [0, 15], sizes = [2, 15], strides = [1, 1]} : vector<2x45xf32> to vector<2x15xf32>
    %318 = vector.extract_strided_slice %308 {offsets = [0, 15], sizes = [2, 15], strides = [1, 1]} : vector<2x45xf32> to vector<2x15xf32>
    %319 = arith.addf %317, %318 : vector<2x15xf32>
    %320 = arith.negf %319 : vector<2x15xf32>
    %321 = math.exp %320 : vector<2x15xf32>
    %cst_61 = arith.constant 1.000000e+00 : f32
    %322 = vector.broadcast %cst_61 : f32 to vector<2x15xf32>
    %323 = arith.addf %322, %321 : vector<2x15xf32>
    %324 = arith.divf %322, %323 : vector<2x15xf32>
    %325 = vector.extract_strided_slice %305 {offsets = [0, 30], sizes = [2, 15], strides = [1, 1]} : vector<2x45xf32> to vector<2x15xf32>
    %326 = vector.extract_strided_slice %308 {offsets = [0, 30], sizes = [2, 15], strides = [1, 1]} : vector<2x45xf32> to vector<2x15xf32>
    %327 = arith.mulf %316, %326 : vector<2x15xf32>
    %328 = arith.addf %325, %327 : vector<2x15xf32>
    %329 = math.tanh %328 : vector<2x15xf32>
    %cst_62 = arith.constant 1.000000e+00 : f32
    %330 = vector.broadcast %cst_62 : f32 to vector<2x15xf32>
    %331 = arith.subf %330, %324 : vector<2x15xf32>
    %332 = arith.mulf %331, %329 : vector<2x15xf32>
    %333 = arith.mulf %324, %302 : vector<2x15xf32>
    %334 = arith.addf %332, %333 : vector<2x15xf32>
    %335 = vector.extract_strided_slice %107 {offsets = [7, 0], sizes = [1, 45], strides = [1, 1]} : vector<16x45xf32> to vector<1x45xf32>
    %336 = vector.extract_strided_slice %107 {offsets = [15, 0], sizes = [1, 45], strides = [1, 1]} : vector<16x45xf32> to vector<1x45xf32>
    %337 = tpu.concatenate %335, %336 in 0 : vector<1x45xf32>, vector<1x45xf32> -> vector<2x45xf32>
    %cst_63 = arith.constant dense<0.000000e+00> : vector<2x45xf32>
    %338 = tpu.matmul %334, %108, %cst_63 {dimension_numbers = #tpu.dot_dimension_numbers<[1], [0], [0], [1], [0, 0, 1, 1], [], []>} : vector<2x15xf32>, vector<15x45xf32>, vector<2x45xf32> -> vector<2x45xf32>
    %339 = vector.broadcast %109 : vector<1x45xf32> to vector<2x45xf32>
    %340 = arith.addf %338, %339 : vector<2x45xf32>
    %341 = vector.extract_strided_slice %337 {offsets = [0, 0], sizes = [2, 15], strides = [1, 1]} : vector<2x45xf32> to vector<2x15xf32>
    %342 = vector.extract_strided_slice %340 {offsets = [0, 0], sizes = [2, 15], strides = [1, 1]} : vector<2x45xf32> to vector<2x15xf32>
    %343 = arith.addf %341, %342 : vector<2x15xf32>
    %344 = arith.negf %343 : vector<2x15xf32>
    %345 = math.exp %344 : vector<2x15xf32>
    %cst_64 = arith.constant 1.000000e+00 : f32
    %346 = vector.broadcast %cst_64 : f32 to vector<2x15xf32>
    %347 = arith.addf %346, %345 : vector<2x15xf32>
    %348 = arith.divf %346, %347 : vector<2x15xf32>
    %349 = vector.extract_strided_slice %337 {offsets = [0, 15], sizes = [2, 15], strides = [1, 1]} : vector<2x45xf32> to vector<2x15xf32>
    %350 = vector.extract_strided_slice %340 {offsets = [0, 15], sizes = [2, 15], strides = [1, 1]} : vector<2x45xf32> to vector<2x15xf32>
    %351 = arith.addf %349, %350 : vector<2x15xf32>
    %352 = arith.negf %351 : vector<2x15xf32>
    %353 = math.exp %352 : vector<2x15xf32>
    %cst_65 = arith.constant 1.000000e+00 : f32
    %354 = vector.broadcast %cst_65 : f32 to vector<2x15xf32>
    %355 = arith.addf %354, %353 : vector<2x15xf32>
    %356 = arith.divf %354, %355 : vector<2x15xf32>
    %357 = vector.extract_strided_slice %337 {offsets = [0, 30], sizes = [2, 15], strides = [1, 1]} : vector<2x45xf32> to vector<2x15xf32>
    %358 = vector.extract_strided_slice %340 {offsets = [0, 30], sizes = [2, 15], strides = [1, 1]} : vector<2x45xf32> to vector<2x15xf32>
    %359 = arith.mulf %348, %358 : vector<2x15xf32>
    %360 = arith.addf %357, %359 : vector<2x15xf32>
    %361 = math.tanh %360 : vector<2x15xf32>
    %cst_66 = arith.constant 1.000000e+00 : f32
    %362 = vector.broadcast %cst_66 : f32 to vector<2x15xf32>
    %363 = arith.subf %362, %356 : vector<2x15xf32>
    %364 = arith.mulf %363, %361 : vector<2x15xf32>
    %365 = arith.mulf %356, %334 : vector<2x15xf32>
    %366 = arith.addf %364, %365 : vector<2x15xf32>
    %cst_67 = arith.constant 0.000000e+00 : f32
    %367 = vector.broadcast %cst_67 : f32 to vector<2x15xf32>
    %368 = arith.maximumf %366, %367 : vector<2x15xf32>
    %c0_68 = arith.constant 0 : index
    %c0_69 = arith.constant 0 : index
    %369 = vector.load %arg3[%c0_68, %c0_69] : memref<2x5xf32, #tpu.memory_space<vmem>>, vector<2x5xf32>
    %c128 = arith.constant 128 : index
    %c0_70 = arith.constant 0 : index
    %370 = vector.load %arg4[%c128, %c0_70] : memref<408x128xf32, #tpu.memory_space<vmem>>, vector<110x65xf32>
    %cst_71 = arith.constant dense<0.000000e+00> : vector<2x65xf32>
    %371 = tpu.matmul %91, %370, %cst_71 {dimension_numbers = #tpu.dot_dimension_numbers<[1], [0], [0], [1], [0, 0, 1, 1], [], []>} : vector<2x110xf32>, vector<110x65xf32>, vector<2x65xf32> -> vector<2x65xf32>
    %c240 = arith.constant 240 : index
    %c0_72 = arith.constant 0 : index
    %372 = vector.load %arg4[%c240, %c0_72] : memref<408x128xf32, #tpu.memory_space<vmem>>, vector<15x65xf32>
    %cst_73 = arith.constant dense<0.000000e+00> : vector<2x65xf32>
    %373 = tpu.matmul %368, %372, %cst_73 {dimension_numbers = #tpu.dot_dimension_numbers<[1], [0], [0], [1], [0, 0, 1, 1], [], []>} : vector<2x15xf32>, vector<15x65xf32>, vector<2x65xf32> -> vector<2x65xf32>
    %374 = arith.addf %371, %373 : vector<2x65xf32>
    %c256 = arith.constant 256 : index
    %c0_74 = arith.constant 0 : index
    %375 = vector.load %arg4[%c256, %c0_74] : memref<408x128xf32, #tpu.memory_space<vmem>>, vector<5x65xf32>
    %cst_75 = arith.constant dense<0.000000e+00> : vector<2x65xf32>
    %376 = tpu.matmul %369, %375, %cst_75 {dimension_numbers = #tpu.dot_dimension_numbers<[1], [0], [0], [1], [0, 0, 1, 1], [], []>} : vector<2x5xf32>, vector<5x65xf32>, vector<2x65xf32> -> vector<2x65xf32>
    %377 = arith.addf %374, %376 : vector<2x65xf32>
    %c264 = arith.constant 264 : index
    %c0_76 = arith.constant 0 : index
    %378 = vector.load %arg4[%c264, %c0_76] : memref<408x128xf32, #tpu.memory_space<vmem>>, vector<1x65xf32>
    %379 = vector.broadcast %378 : vector<1x65xf32> to vector<2x65xf32>
    %380 = arith.addf %377, %379 : vector<2x65xf32>
    %cst_77 = arith.constant 0.000000e+00 : f32
    %381 = vector.broadcast %cst_77 : f32 to vector<2x65xf32>
    %382 = arith.maximumf %380, %381 : vector<2x65xf32>
    %c272 = arith.constant 272 : index
    %c0_78 = arith.constant 0 : index
    %383 = vector.load %arg4[%c272, %c0_78] : memref<408x128xf32, #tpu.memory_space<vmem>>, vector<5x65xf32>
    %cst_79 = arith.constant dense<0.000000e+00> : vector<2x65xf32>
    %384 = tpu.matmul %369, %383, %cst_79 {dimension_numbers = #tpu.dot_dimension_numbers<[1], [0], [0], [1], [0, 0, 1, 1], [], []>} : vector<2x5xf32>, vector<5x65xf32>, vector<2x65xf32> -> vector<2x65xf32>
    %c280 = arith.constant 280 : index
    %c0_80 = arith.constant 0 : index
    %385 = vector.load %arg4[%c280, %c0_80] : memref<408x128xf32, #tpu.memory_space<vmem>>, vector<1x65xf32>
    %386 = vector.broadcast %385 : vector<1x65xf32> to vector<2x65xf32>
    %387 = arith.addf %384, %386 : vector<2x65xf32>
    %cst_81 = arith.constant 0.000000e+00 : f32
    %388 = vector.broadcast %cst_81 : f32 to vector<2x65xf32>
    %389 = arith.maximumf %387, %388 : vector<2x65xf32>
    %390 = arith.addf %382, %389 : vector<2x65xf32>
    %c288 = arith.constant 288 : index
    %c0_82 = arith.constant 0 : index
    %391 = vector.load %arg4[%c288, %c0_82] : memref<408x128xf32, #tpu.memory_space<vmem>>, vector<65x32xf32>
    %cst_83 = arith.constant dense<0.000000e+00> : vector<2x32xf32>
    %392 = tpu.matmul %390, %391, %cst_83 {dimension_numbers = #tpu.dot_dimension_numbers<[1], [0], [0], [1], [0, 0, 1, 1], [], []>} : vector<2x65xf32>, vector<65x32xf32>, vector<2x32xf32> -> vector<2x32xf32>
    %c360 = arith.constant 360 : index
    %c0_84 = arith.constant 0 : index
    %393 = vector.load %arg4[%c360, %c0_84] : memref<408x128xf32, #tpu.memory_space<vmem>>, vector<1x32xf32>
    %394 = vector.broadcast %393 : vector<1x32xf32> to vector<2x32xf32>
    %395 = arith.addf %392, %394 : vector<2x32xf32>
    %c368 = arith.constant 368 : index
    %c0_85 = arith.constant 0 : index
    %396 = vector.load %arg4[%c368, %c0_85] : memref<408x128xf32, #tpu.memory_space<vmem>>, vector<32x1xf32>
    %cst_86 = arith.constant dense<0.000000e+00> : vector<2x1xf32>
    %397 = tpu.matmul %395, %396, %cst_86 {dimension_numbers = #tpu.dot_dimension_numbers<[1], [0], [0], [1], [0, 0, 1, 1], [], []>} : vector<2x32xf32>, vector<32x1xf32>, vector<2x1xf32> -> vector<2x1xf32>
    %c400 = arith.constant 400 : index
    %c0_87 = arith.constant 0 : index
    %398 = vector.load %arg4[%c400, %c0_87] : memref<408x128xf32, #tpu.memory_space<vmem>>, vector<1x1xf32>
    %399 = vector.broadcast %398 : vector<1x1xf32> to vector<2x1xf32>
    %400 = arith.addf %397, %399 : vector<2x1xf32>
    %c0_88 = arith.constant 0 : index
    %c0_89 = arith.constant 0 : index
    %401 = vector.load %arg5[%c0_88, %c0_89] : memref<2x1xf32, #tpu.memory_space<vmem>>, vector<2x1xf32>
    tpu.vector_store %arg5[%c0_88, %c0_89], %400 {strides = array<i32>} : memref<2x1xf32, #tpu.memory_space<vmem>>, vector<2x1xf32>,
    return
  }
}

</mosaic_0001>

<llo_original>
// kernel: inv_sales_critic_forward.1
$region0: #{inv_sales_critic_forward.1}
  #allocation0 [shape = 'u32[]', space=smem, size = 0x4, offset = 0x4, fixed_abs, tag = 'smem constant byte address 0x4 - core index']
  #allocation1 [shape = 'u32[144,128]{1,0:T(1,128)}', space=vmem, size = 0x12000, scoped, tag = 'internal scratch']
  %s0 = inlined_call_operand.vmem [shape: f32[2,16,8], index: 0, kind: input, shape index: {}]
  %s1 = inlined_call_operand.vmem [shape: f32[2,8,6], index: 1, kind: input, shape index: {}]
  %s2 = inlined_call_operand.vmem [shape: f32[2,8,4], index: 2, kind: input, shape index: {}]
  %s3 = inlined_call_operand.vmem [shape: f32[2,5], index: 3, kind: input, shape index: {}]
  %s4 = inlined_call_operand.hbm [shape: f32[408,128], index: 4, kind: input, shape index: {}]
  %s5 = inlined_call_operand.vmem [shape: f32[2,1], index: 5, kind: output, shape index: {}]
  %s6 = sld [smem:[#allocation0]]
  $region34: #{inv_sales_critic_forward.1} parent=0
    _
  %s8 = ssub.s32 1, %s6
  %s9 = scalar_select 0, %s8, %s6
  $region1: #{inv_sales_critic_forward.1} parent=0
    #allocation2 [shape = 'u8[208896]{0}', space=vmem, size = 0x33000, scoped, tag = 'input window, operand 4, single buffered']
    #allocation3 [shape = 's32[1]{0}', space=sflag, size = 0x4, scoped, tag = 'scoped memory for inv_sales_critic_forward.1']
    %10 = vsyncpa [#allocation3], 0
    // Predicated region
    $region2: #{inv_sales_critic_forward.1} parent=1 // pred_check
      _
    $region3: #{inv_sales_critic_forward.1} parent=1 // pred_check_branch
      %12 = sbr.rel (0) target = $region5
    $region4: #{inv_sales_critic_forward.1} parent=1 // pred_region
      _
    $region5: #{inv_sales_critic_forward.1} parent=1 // pred_fallthru
      _
    // Predicated region
    $region6: #{inv_sales_critic_forward.1} parent=1 // pred_check
      _
    $region7: #{inv_sales_critic_forward.1} parent=1 // pred_check_branch
      %14 = sbr.rel (0) target = $region9
    $region8: #{inv_sales_critic_forward.1} parent=1 // pred_region
      _
    $region9: #{inv_sales_critic_forward.1} parent=1 // pred_fallthru
      _
    // Predicated region
    $region10: #{inv_sales_critic_forward.1} parent=1 // pred_check
      _
    $region11: #{inv_sales_critic_forward.1} parent=1 // pred_check_branch
      %16 = sbr.rel (0) target = $region13
    $region12: #{inv_sales_critic_forward.1} parent=1 // pred_region
      _
    $region13: #{inv_sales_critic_forward.1} parent=1 // pred_fallthru
      _
    // Predicated region
    $region14: #{inv_sales_critic_forward.1} parent=1 // pred_check
      _
    $region15: #{inv_sales_critic_forward.1} parent=1 // pred_check_branch
      %18 = sbr.rel (0) target = $region17
    $region16: #{inv_sales_critic_forward.1} parent=1 // pred_region
      _
    $region17: #{inv_sales_critic_forward.1} parent=1 // pred_fallthru
      _
    // Predicated region
    $region18: #{inv_sales_critic_forward.1} parent=1 // pred_check
      _
    $region19: #{inv_sales_critic_forward.1} parent=1 // pred_check_branch
      %20 = sbr.rel (0) target = $region21
    $region20: #{inv_sales_critic_forward.1} parent=1 // pred_region
      %s22 = ssub.s32 6528, 6528
      %23 = vsyncadd [#allocation3], %s22
      %s24 = sshll.u32 [#allocation2], 4
      %s25 = int_to_ptr.vmem [resolvable:$true] %s24
      %30 = dma.hbm_to_vmem [thread:$0]  %s4, 6528, %s25, [#allocation3], 128, 128, 8
    $region21: #{inv_sales_critic_forward.1} parent=1 // pred_fallthru
      _
    // Predicated region
    $region22: #{inv_sales_critic_forward.1} parent=1 // pred_check
      _
    $region23: #{inv_sales_critic_forward.1} parent=1 // pred_check_branch
      %32 = sbr.rel (0) target = $region25
    $region24: #{inv_sales_critic_forward.1} parent=1 // pred_region
      %33 = dma.done [#allocation3], 6528
    $region25: #{inv_sales_critic_forward.1} parent=1 // pred_fallthru
      _
    %v34 = vld [vmem:[%s0] sm:$0xff]
    %v35 = vld [vmem:[%s0 + $0x8] sm:$0xff]
    %vm38 = vcmask 1041408
    %v39 = vrot.slane %v34, 6
    %v40 = vrot.slane %v35, 6
    %v41 = vsel %vm38, %v39, %v40
    %v45 = vsel %vm38, 0.0, %v39
    %v46 = vsel %vm38, %v40, 0.0
    %s47 = scalar_lea.vmem %s0, 16
    %v48 = vld [vmem:[%s47] sm:$0xff]
    %v49 = vld [vmem:[%s47 + $0x8] sm:$0xff]
    %v52 = vrot.slane %v48, 6
    %v53 = vrot.slane %v49, 6
    %v54 = vsel %vm38, %v52, %v53
    %v58 = vsel %vm38, 0.0, %v52
    %v59 = vsel %vm38, %v53, 0.0
    %vm62 = vcmask 1046528
    %v63 = vrot.slane %v45, 1
    %v64 = vrot.slane %v41, 1
    %v65 = vsel %vm62, %v63, %v64
    %v66 = vrot.slane %v46, 1
    %v67 = vsel %vm62, %v64, %v66
    %68 = vrot.lane.b32.xlu0 %v65, 8
    %v69 = vpop.permute.xlu0 %68
    %70 = vrot.lane.b32.xlu0 %v67, 8
    %v71 = vpop.permute.xlu0 %70
    %72 = vrot.lane.b32.xlu0 %v66, 8
    %v73 = vpop.permute.xlu0 %72
    %vm77 = vcmask 1045504
    %v78 = vrot.slane %v45, 2
    %v79 = vrot.slane %v41, 2
    %v80 = vsel %vm77, %v78, %v79
    %v81 = vrot.slane %v46, 2
    %v82 = vsel %vm77, %v79, %v81
    %83 = vrot.lane.b32.xlu0 %v80, 16
    %v84 = vpop.permute.xlu0 %83
    %85 = vrot.lane.b32.xlu0 %v82, 16
    %v86 = vpop.permute.xlu0 %85
    %87 = vrot.lane.b32.xlu0 %v81, 16
    %v88 = vpop.permute.xlu0 %87
    %vm92 = vcmask 64512
    %v93 = vsel %vm92, %v45, %v69
    %v94 = vsel %vm92, %v41, %v71
    %v95 = vsel %vm92, %v46, %v73
    %vm96 = vcmask 130048
    %v97 = vsel %vm96, %v93, %v84
    %v98 = vsel %vm96, %v94, %v86
    %v99 = vsel %vm96, %v95, %v88
    %v102 = vrot.slane %v58, 1
    %v103 = vrot.slane %v54, 1
    %v104 = vsel %vm62, %v102, %v103
    %v105 = vrot.slane %v59, 1
    %v106 = vsel %vm62, %v103, %v105
    %107 = vrot.lane.b32.xlu0 %v104, 8
    %v108 = vpop.permute.xlu0 %107
    %109 = vrot.lane.b32.xlu0 %v106, 8
    %v110 = vpop.permute.xlu0 %109
    %111 = vrot.lane.b32.xlu0 %v105, 8
    %v112 = vpop.permute.xlu0 %111
    %v116 = vrot.slane %v58, 2
    %v117 = vrot.slane %v54, 2
    %v118 = vsel %vm77, %v116, %v117
    %v119 = vrot.slane %v59, 2
    %v120 = vsel %vm77, %v117, %v119
    %121 = vrot.lane.b32.xlu0 %v118, 16
    %v122 = vpop.permute.xlu0 %121
    %123 = vrot.lane.b32.xlu0 %v120, 16
    %v124 = vpop.permute.xlu0 %123
    %125 = vrot.lane.b32.xlu0 %v119, 16
    %v126 = vpop.permute.xlu0 %125
    %v130 = vsel %vm92, %v58, %v108
    %v131 = vsel %vm92, %v54, %v110
    %v132 = vsel %vm92, %v59, %v112
    %v133 = vsel %vm96, %v130, %v122
    %v134 = vsel %vm96, %v131, %v124
    %v135 = vsel %vm96, %v132, %v126
    %v139 = vrot.slane %v133, 6
    %v140 = vrot.slane %v134, 6
    %v141 = vsel %vm38, %v139, %v140
    %v142 = vrot.slane %v135, 6
    %v143 = vsel %vm38, %v140, %v142
    %v145 = vsel %vm38, %v99, %v139
    %v146 = vld [vmem:[#allocation2] sm:$0xff]
    %v147 = vld [vmem:[#allocation2 + $0x8] sm:$0xff]
    %v148 = vld [vmem:[#allocation2 + $0x10] sm:$0xff]
    %v149 = vld [vmem:[#allocation2 + $0x18] sm:$0x1]
    %v150 = vlaneseq
    %v151 = vshrl.u32 %v150, 7
    %v152 = vsub.s32 0, %v151
    %v153 = vrot.slane %v149, %v152
    %vm154 = vcmask 195584
    %v156 = vsel %vm154, %v97, 0
    %v159 = vsel %vm154, %v98, 0
    %v162 = vsel %vm154, %v145, 0
    %v164 = vsel %vm154, %v141, 0
    %v166 = vsel %vm154, %v143, 0
    %168 = vmatprep.subr.mxu0 0.0
    %169 = vmatpush1.msra.mxu0 %v146
    %170 = vmatprep.subr.mxu0 0.0
    %171 = vmatpush1.msra.mxu0 %v147
    %172 = vmatprep.subr.mxu0 0.0
    %173 = vmatpush1.msra.mxu0 %v148
    %174 = vmatprep.subr.mxu0 0.0
    %175 = vmatpush1.msra.mxu0 0.0
    %176 = vmatprep.subr.mxu0 0.0
    %177 = vmatpush1.msra.mxu0 0.0
    %178 = vmatprep.subr.mxu0 0.0
    %179 = vmatpush1.msra.mxu0 0.0
    %180 = vmatprep.subr.mxu0 0.0
    %181 = vmatpush1.msra.mxu0 0.0
    %182 = vmatprep.subr.mxu0 0.0
    %183 = vmatpush1.msra.mxu0 0.0
    %184 = vmatprep.subr.mxu0 0.0
    %185 = vmatpush1.msra.mxu0 0.0
    %186 = vmatprep.subr.mxu0 0.0
    %187 = vmatpush1.msra.mxu0 0.0
    %188 = vmatprep.subr.mxu0 0.0
    %189 = vmatpush1.msra.mxu0 0.0
    %190 = vmatprep.subr.mxu0 0.0
    %191 = vmatpush1.msra.mxu0 0.0
    %192 = vmatprep.subr.mxu0 0.0
    %193 = vmatpush1.msra.mxu0 0.0
    %194 = vmatprep.subr.mxu0 0.0
    %195 = vmatpush1.msra.mxu0 0.0
    %196 = vmatprep.subr.mxu0 0.0
    %197 = vmatpush1.msra.mxu0 0.0
    %198 = vmatprep.subr.mxu0 0.0
    %199 = vmatpush1.msra.mxu0 0.0
    %200 = vmatprep.subr.mxu0 0.0
    %201 = vmatpush1.msra.mxu0 0.0
    %202 = vmatprep.subr.mxu0 0.0
    %203 = vmatpush1.msra.mxu0 0.0
    %204 = vmatprep.subr.mxu0 0.0
    %205 = vmatpush1.msra.mxu0 0.0
    %206 = vmatprep.subr.mxu0 0.0
    %207 = vmatpush1.msra.mxu0 0.0
    %208 = vmatprep.subr.mxu0 0.0
    %209 = vmatpush1.msra.mxu0 0.0
    %210 = vmatprep.subr.mxu0 0.0
    %211 = vmatpush1.msra.mxu0 0.0
    %212 = vmatprep.subr.mxu0 0.0
    %213 = vmatpush1.msra.mxu0 0.0
    %214 = vmatprep.subr.mxu0 0.0
    %215 = vmatpush1.msra.mxu0 0.0
    %216 = vmatprep.subr.mxu0 0.0
    %217 = vmatpush1.msra.mxu0 0.0
    %218 = vmatprep.subr.mxu0 0.0
    %219 = vmatpush1.msra.mxu0 0.0
    %220 = vmatprep.subr.mxu0 0.0
    %221 = vmatpush1.msra.mxu0 0.0
    %222 = vmatprep.subr.mxu0 0.0
    %223 = vmatpush1.msra.mxu0 0.0
    %224 = vmatprep.subr.mxu0 0.0
    %225 = vmatpush1.msra.mxu0 0.0
    %226 = vmatprep.subr.mxu0 0.0
    %227 = vmatpush1.msra.mxu0 0.0
    %228 = vmatprep.subr.mxu0 0.0
    %229 = vmatpush1.msra.mxu0 0.0
    %230 = vmatprep.subr.mxu0 0.0
    %231 = vmatpush1.msra.mxu0 0.0
    %232 = vmatprep.mubr.f32.mxu0 0.0
    %233 = vmatmul.mubr.f32.gmra.mrb[0].mxu0 %v156
    %v234 = vpop.f32.mrb[0].mxu0
    %v235 = vadd.f32 %v153, %v234
    %v236 = vpop.f32.mrb[0].mxu0
    %237 = vmatprep.mubr.f32.mxu0 0.0
    %238 = vmatmul.mubr.f32.gmra.mrb[0].mxu0 %v159
    %v239 = vpop.f32.mrb[0].mxu0
    %v240 = vadd.f32 %v153, %v239
    %v241 = vpop.f32.mrb[0].mxu0
    %242 = vmatprep.mubr.f32.mxu0 0.0
    %243 = vmatmul.mubr.f32.gmra.mrb[0].mxu0 %v162
    %v244 = vpop.f32.mrb[0].mxu0
    %v245 = vadd.f32 %v153, %v244
    %v246 = vpop.f32.mrb[0].mxu0
    %247 = vmatprep.mubr.f32.mxu0 0.0
    %248 = vmatmul.mubr.f32.gmra.mrb[0].mxu0 %v164
    %v249 = vpop.f32.mrb[0].mxu0
    %v250 = vadd.f32 %v153, %v249
    %v251 = vpop.f32.mrb[0].mxu0
    %252 = vmatprep.mubr.f32.mxu0 0.0
    %253 = vmatmul.mubr.f32.gmra.mrb[0].mxu0 %v166
    %v254 = vpop.f32.mrb[0].mxu0
    %v255 = vadd.f32 %v153, %v254
    %v256 = vpop.f32.mrb[0].mxu0
    %257 = vdwg.mxu0
    %v258 = vmax.f32 %v235, 0.0
    %v259 = vmax.f32 %v240, 0.0
    %v260 = vmax.f32 %v245, 0.0
    %v261 = vmax.f32 %v250, 0.0
    %v262 = vmax.f32 %v255, 0.0
    %v265 = vrot.slane %v258, 1
    %v266 = vrot.slane %v259, 1
    %v267 = vsel %vm62, %v265, %v266
    %268 = vrot.lane.b32.xlu0 %v267, 4
    %v269 = vpop.permute.xlu0 %268
    %270 = vrot.lane.b32.xlu0 %v266, 4
    %v271 = vpop.permute.xlu0 %270
    %v274 = vrot.slane %v258, 2
    %v275 = vrot.slane %v259, 2
    %v276 = vsel %vm77, %v274, %v275
    %277 = vrot.lane.b32.xlu0 %v276, 8
    %v278 = vpop.permute.xlu0 %277
    %279 = vrot.lane.b32.xlu0 %v275, 8
    %v280 = vpop.permute.xlu0 %279
    %vm283 = vcmask 1044480
    %v284 = vrot.slane %v258, 3
    %v285 = vrot.slane %v259, 3
    %v286 = vsel %vm283, %v284, %v285
    %287 = vrot.lane.b32.xlu0 %v286, 12
    %v288 = vpop.permute.xlu0 %287
    %289 = vrot.lane.b32.xlu0 %v285, 12
    %v290 = vpop.permute.xlu0 %289
    %vm294 = vcmask 1043456
    %v295 = vrot.slane %v258, 4
    %v296 = vrot.slane %v259, 4
    %v297 = vsel %vm294, %v295, %v296
    %v298 = vrot.slane %v260, 4
    %v299 = vsel %vm294, %v296, %v298
    %300 = vrot.lane.b32.xlu0 %v297, 16
    %v301 = vpop.permute.xlu0 %300
    %302 = vrot.lane.b32.xlu0 %v299, 16
    %v303 = vpop.permute.xlu0 %302
    %vm306 = vcmask 1042432
    %v307 = vrot.slane %v258, 5
    %v308 = vrot.slane %v259, 5
    %v309 = vsel %vm306, %v307, %v308
    %v310 = vrot.slane %v260, 5
    %v311 = vsel %vm306, %v308, %v310
    %312 = vrot.lane.b32.xlu0 %v309, 20
    %v313 = vpop.permute.xlu0 %312
    %314 = vrot.lane.b32.xlu0 %v311, 20
    %v315 = vpop.permute.xlu0 %314
    %vm318 = vcmask 31744
    %v319 = vsel %vm318, %v258, %v269
    %v320 = vsel %vm318, %v259, %v271
    %v321 = vsel %vm92, %v319, %v278
    %v322 = vsel %vm92, %v320, %v280
    %vm323 = vcmask 97280
    %v324 = vsel %vm323, %v321, %v288
    %v325 = vsel %vm323, %v322, %v290
    %v326 = vsel %vm96, %v324, %v301
    %v327 = vsel %vm96, %v325, %v303
    %vm328 = vcmask 162816
    %v329 = vsel %vm328, %v326, %v313
    %v330 = vsel %vm328, %v327, %v315
    %v332 = vrot.slane %v260, 1
    %v333 = vrot.slane %v261, 1
    %v334 = vsel %vm62, %v332, %v333
    %335 = vrot.lane.b32.xlu0 %v334, 4
    %v336 = vpop.permute.xlu0 %335
    %337 = vrot.lane.b32.xlu0 %v333, 4
    %v338 = vpop.permute.xlu0 %337
    %v342 = vrot.slane %v260, 2
    %v343 = vrot.slane %v261, 2
    %v344 = vsel %vm77, %v342, %v343
    %v345 = vrot.slane %v262, 2
    %v346 = vsel %vm77, %v343, %v345
    %347 = vrot.lane.b32.xlu0 %v344, 8
    %v348 = vpop.permute.xlu0 %347
    %349 = vrot.lane.b32.xlu0 %v346, 8
    %v350 = vpop.permute.xlu0 %349
    %v353 = vrot.slane %v260, 3
    %v354 = vrot.slane %v261, 3
    %v355 = vsel %vm283, %v353, %v354
    %v356 = vrot.slane %v262, 3
    %v357 = vsel %vm283, %v354, %v356
    %358 = vrot.lane.b32.xlu0 %v355, 12
    %v359 = vpop.permute.xlu0 %358
    %360 = vrot.lane.b32.xlu0 %v357, 12
    %v361 = vpop.permute.xlu0 %360
    %v364 = vrot.slane %v261, 4
    %v365 = vsel %vm294, %v298, %v364
    %v366 = vrot.slane %v262, 4
    %v367 = vsel %vm294, %v364, %v366
    %368 = vrot.lane.b32.xlu0 %v365, 16
    %v369 = vpop.permute.xlu0 %368
    %370 = vrot.lane.b32.xlu0 %v367, 16
    %v371 = vpop.permute.xlu0 %370
    %v374 = vrot.slane %v261, 5
    %v375 = vsel %vm306, %v310, %v374
    %v376 = vrot.slane %v262, 5
    %v377 = vsel %vm306, %v374, %v376
    %378 = vrot.lane.b32.xlu0 %v375, 20
    %v379 = vpop.permute.xlu0 %378
    %380 = vrot.lane.b32.xlu0 %v377, 20
    %v381 = vpop.permute.xlu0 %380
    %v384 = vsel %vm318, %v260, %v336
    %v385 = vsel %vm318, %v261, %v338
    %v386 = vsel %vm92, %v384, %v348
    %v387 = vsel %vm92, %v385, %v350
    %v388 = vsel %vm323, %v386, %v359
    %v389 = vsel %vm323, %v387, %v361
    %v390 = vsel %vm96, %v388, %v369
    %v391 = vsel %vm96, %v389, %v371
    %v392 = vsel %vm328, %v390, %v379
    %v393 = vsel %vm328, %v391, %v381
    %v396 = vrot.slane %v392, 5
    %v397 = vrot.slane %v393, 5
    %v398 = vsel %vm306, %v396, %v397
    %v400 = vsel %vm283, %v330, %v396
    %v401 = vld [vmem:[#allocation2 + $0x20] sm:$0xff]
    %v402 = vld [vmem:[#allocation2 + $0x28] sm:$0xff]
    %v403 = vld [vmem:[#allocation2 + $0x30] sm:$0xff]
    %v404 = vld [vmem:[#allocation2 + $0x38] sm:$0x1]
    %v405 = vlaneseq
    %v406 = vshrl.u32 %v405, 7
    %v407 = vsub.s32 0, %v406
    %v408 = vrot.slane %v404, %v407
    %v410 = vsel %vm154, %v329, 0
    %v413 = vsel %vm154, %v400, 0
    %v415 = vsel %vm154, %v398, 0
    %v417 = vsel %vm154, %v397, 0
    %419 = vmatprep.subr.mxu0 0.0
    %420 = vmatpush1.msra.mxu0 %v401
    %421 = vmatprep.subr.mxu0 0.0
    %422 = vmatpush1.msra.mxu0 %v402
    %423 = vmatprep.subr.mxu0 0.0
    %424 = vmatpush1.msra.mxu0 %v403
    %425 = vmatprep.subr.mxu0 0.0
    %426 = vmatpush1.msra.mxu0 0.0
    %427 = vmatprep.subr.mxu0 0.0
    %428 = vmatpush1.msra.mxu0 0.0
    %429 = vmatprep.subr.mxu0 0.0
    %430 = vmatpush1.msra.mxu0 0.0
    %431 = vmatprep.subr.mxu0 0.0
    %432 = vmatpush1.msra.mxu0 0.0
    %433 = vmatprep.subr.mxu0 0.0
    %434 = vmatpush1.msra.mxu0 0.0
    %435 = vmatprep.subr.mxu0 0.0
    %436 = vmatpush1.msra.mxu0 0.0
    %437 = vmatprep.subr.mxu0 0.0
    %438 = vmatpush1.msra.mxu0 0.0
    %439 = vmatprep.subr.mxu0 0.0
    %440 = vmatpush1.msra.mxu0 0.0
    %441 = vmatprep.subr.mxu0 0.0
    %442 = vmatpush1.msra.mxu0 0.0
    %443 = vmatprep.subr.mxu0 0.0
    %444 = vmatpush1.msra.mxu0 0.0
    %445 = vmatprep.subr.mxu0 0.0
    %446 = vmatpush1.msra.mxu0 0.0
    %447 = vmatprep.subr.mxu0 0.0
    %448 = vmatpush1.msra.mxu0 0.0
    %449 = vmatprep.subr.mxu0 0.0
    %450 = vmatpush1.msra.mxu0 0.0
    %451 = vmatprep.subr.mxu0 0.0
    %452 = vmatpush1.msra.mxu0 0.0
    %453 = vmatprep.subr.mxu0 0.0
    %454 = vmatpush1.msra.mxu0 0.0
    %455 = vmatprep.subr.mxu0 0.0
    %456 = vmatpush1.msra.mxu0 0.0
    %457 = vmatprep.subr.mxu0 0.0
    %458 = vmatpush1.msra.mxu0 0.0
    %459 = vmatprep.subr.mxu0 0.0
    %460 = vmatpush1.msra.mxu0 0.0
    %461 = vmatprep.subr.mxu0 0.0
    %462 = vmatpush1.msra.mxu0 0.0
    %463 = vmatprep.subr.mxu0 0.0
    %464 = vmatpush1.msra.mxu0 0.0
    %465 = vmatprep.subr.mxu0 0.0
    %466 = vmatpush1.msra.mxu0 0.0
    %467 = vmatprep.subr.mxu0 0.0
    %468 = vmatpush1.msra.mxu0 0.0
    %469 = vmatprep.subr.mxu0 0.0
    %470 = vmatpush1.msra.mxu0 0.0
    %471 = vmatprep.subr.mxu0 0.0
    %472 = vmatpush1.msra.mxu0 0.0
    %473 = vmatprep.subr.mxu0 0.0
    %474 = vmatpush1.msra.mxu0 0.0
    %475 = vmatprep.subr.mxu0 0.0
    %476 = vmatpush1.msra.mxu0 0.0
    %477 = vmatprep.subr.mxu0 0.0
    %478 = vmatpush1.msra.mxu0 0.0
    %479 = vmatprep.subr.mxu0 0.0
    %480 = vmatpush1.msra.mxu0 0.0
    %481 = vmatprep.subr.mxu0 0.0
    %482 = vmatpush1.msra.mxu0 0.0
    %483 = vmatprep.mubr.f32.mxu0 0.0
    %484 = vmatmul.mubr.f32.gmra.mrb[0].mxu0 %v410
    %v485 = vpop.f32.mrb[0].mxu0
    %v486 = vadd.f32 %v408, %v485
    %v487 = vpop.f32.mrb[0].mxu0
    %488 = vmatprep.mubr.f32.mxu0 0.0
    %489 = vmatmul.mubr.f32.gmra.mrb[0].mxu0 %v413
    %v490 = vpop.f32.mrb[0].mxu0
    %v491 = vadd.f32 %v408, %v490
    %v492 = vpop.f32.mrb[0].mxu0
    %493 = vmatprep.mubr.f32.mxu0 0.0
    %494 = vmatmul.mubr.f32.gmra.mrb[0].mxu0 %v415
    %v495 = vpop.f32.mrb[0].mxu0
    %v496 = vadd.f32 %v408, %v495
    %v497 = vpop.f32.mrb[0].mxu0
    %498 = vmatprep.mubr.f32.mxu0 0.0
    %499 = vmatmul.mubr.f32.gmra.mrb[0].mxu0 %v417
    %v500 = vpop.f32.mrb[0].mxu0
    %v501 = vadd.f32 %v408, %v500
    %v502 = vpop.f32.mrb[0].mxu0
    %503 = vdwg.mxu0
    %v504 = vmax.f32 %v486, 0.0
    %v505 = vmax.f32 %v491, 0.0
    %v506 = vmax.f32 %v496, 0.0
    %v507 = vmax.f32 %v501, 0.0
    %v510 = vrot.slane %v504, 1
    %v511 = vrot.slane %v505, 1
    %v512 = vsel %vm62, %v510, %v511
    %513 = vrot.lane.b32.xlu0 %v512, 2
    %v514 = vpop.permute.xlu0 %513
    %515 = vrot.lane.b32.xlu0 %v511, 2
    %v516 = vpop.permute.xlu0 %515
    %v519 = vrot.slane %v504, 2
    %v520 = vrot.slane %v505, 2
    %v521 = vsel %vm77, %v519, %v520
    %522 = vrot.lane.b32.xlu0 %v521, 4
    %v523 = vpop.permute.xlu0 %522
    %524 = vrot.lane.b32.xlu0 %v520, 4
    %v525 = vpop.permute.xlu0 %524
    %vm528 = vcmask 15360
    %v529 = vsel %vm528, %v504, %v514
    %v530 = vsel %vm528, %v505, %v516
    %v531 = vsel %vm318, %v529, %v523
    %v532 = vsel %vm318, %v530, %v525
    %v535 = vrot.slane %v506, 1
    %v536 = vsel %vm62, %v511, %v535
    %v537 = vrot.slane %v507, 1
    %v538 = vsel %vm62, %v535, %v537
    %539 = vrot.lane.b32.xlu0 %v536, 2
    %v540 = vpop.permute.xlu0 %539
    %541 = vrot.lane.b32.xlu0 %v538, 2
    %v542 = vpop.permute.xlu0 %541
    %v545 = vrot.slane %v506, 2
    %v546 = vsel %vm77, %v520, %v545
    %v547 = vrot.slane %v507, 2
    %v548 = vsel %vm77, %v545, %v547
    %549 = vrot.lane.b32.xlu0 %v546, 4
    %v550 = vpop.permute.xlu0 %549
    %551 = vrot.lane.b32.xlu0 %v548, 4
    %v552 = vpop.permute.xlu0 %551
    %v555 = vsel %vm528, %v505, %v540
    %v556 = vsel %vm528, %v506, %v542
    %v557 = vsel %vm318, %v555, %v550
    %v558 = vsel %vm318, %v556, %v552
    %v561 = vrot.slane %v557, 2
    %v562 = vrot.slane %v558, 2
    %v563 = vsel %vm77, %v561, %v562
    %v565 = vsel %vm306, %v532, %v563
    %v566 = vld [vmem:[#allocation2 + $0x40] sm:$0x3f]
    %v567 = vld [vmem:[#allocation2 + $0x48] sm:$0x1]
    %v568 = vlaneseq
    %v569 = vshrl.u32 %v568, 7
    %v570 = vsub.s32 0, %v569
    %v571 = vrot.slane %v567, %v570
    %vm572 = vcmask 48128
    %v574 = vsel %vm572, %v531, 0
    %v577 = vsel %vm572, %v565, 0
    %v579 = vsel %vm572, %v562, 0
    %v582 = vsel %vm77, %v566, 0
    %584 = vmatprep.subr.mxu0 0.0
    %585 = vmatpush1.msra.mxu0 %v582
    %586 = vmatprep.subr.mxu0 0.0
    %587 = vmatpush1.msra.mxu0 0.0
    %588 = vmatprep.subr.mxu0 0.0
    %589 = vmatpush1.msra.mxu0 0.0
    %590 = vmatprep.subr.mxu0 0.0
    %591 = vmatpush1.msra.mxu0 0.0
    %592 = vmatprep.subr.mxu0 0.0
    %593 = vmatpush1.msra.mxu0 0.0
    %594 = vmatprep.subr.mxu0 0.0
    %595 = vmatpush1.msra.mxu0 0.0
    %596 = vmatprep.subr.mxu0 0.0
    %597 = vmatpush1.msra.mxu0 0.0
    %598 = vmatprep.subr.mxu0 0.0
    %599 = vmatpush1.msra.mxu0 0.0
    %600 = vmatprep.subr.mxu0 0.0
    %601 = vmatpush1.msra.mxu0 0.0
    %602 = vmatprep.subr.mxu0 0.0
    %603 = vmatpush1.msra.mxu0 0.0
    %604 = vmatprep.subr.mxu0 0.0
    %605 = vmatpush1.msra.mxu0 0.0
    %606 = vmatprep.subr.mxu0 0.0
    %607 = vmatpush1.msra.mxu0 0.0
    %608 = vmatprep.subr.mxu0 0.0
    %609 = vmatpush1.msra.mxu0 0.0
    %610 = vmatprep.subr.mxu0 0.0
    %611 = vmatpush1.msra.mxu0 0.0
    %612 = vmatprep.subr.mxu0 0.0
    %613 = vmatpush1.msra.mxu0 0.0
    %614 = vmatprep.subr.mxu0 0.0
    %615 = vmatpush1.msra.mxu0 0.0
    %616 = vmatprep.subr.mxu0 0.0
    %617 = vmatpush1.msra.mxu0 0.0
    %618 = vmatprep.subr.mxu0 0.0
    %619 = vmatpush1.msra.mxu0 0.0
    %620 = vmatprep.subr.mxu0 0.0
    %621 = vmatpush1.msra.mxu0 0.0
    %622 = vmatprep.subr.mxu0 0.0
    %623 = vmatpush1.msra.mxu0 0.0
    %624 = vmatprep.subr.mxu0 0.0
    %625 = vmatpush1.msra.mxu0 0.0
    %626 = vmatprep.subr.mxu0 0.0
    %627 = vmatpush1.msra.mxu0 0.0
    %628 = vmatprep.subr.mxu0 0.0
    %629 = vmatpush1.msra.mxu0 0.0
    %630 = vmatprep.subr.mxu0 0.0
    %631 = vmatpush1.msra.mxu0 0.0
    %632 = vmatprep.subr.mxu0 0.0
    %633 = vmatpush1.msra.mxu0 0.0
    %634 = vmatprep.subr.mxu0 0.0
    %635 = vmatpush1.msra.mxu0 0.0
    %636 = vmatprep.subr.mxu0 0.0
    %637 = vmatpush1.msra.mxu0 0.0
    %638 = vmatprep.subr.mxu0 0.0
    %639 = vmatpush1.msra.mxu0 0.0
    %640 = vmatprep.subr.mxu0 0.0
    %641 = vmatpush1.msra.mxu0 0.0
    %642 = vmatprep.subr.mxu0 0.0
    %643 = vmatpush1.msra.mxu0 0.0
    %644 = vmatprep.subr.mxu0 0.0
    %645 = vmatpush1.msra.mxu0 0.0
    %646 = vmatprep.subr.mxu0 0.0
    %647 = vmatpush1.msra.mxu0 0.0
    %648 = vmatprep.mubr.f32.mxu0 0.0
    %649 = vmatmul.mubr.f32.gmra.mrb[0].mxu0 %v574
    %v650 = vpop.f32.mrb[0].mxu0
    %v651 = vadd.f32 %v571, %v650
    %v652 = vpop.f32.mrb[0].mxu0
    %653 = vmatprep.mubr.f32.mxu0 0.0
    %654 = vmatmul.mubr.f32.gmra.mrb[0].mxu0 %v577
    %v655 = vpop.f32.mrb[0].mxu0
    %v656 = vadd.f32 %v571, %v655
    %v657 = vpop.f32.mrb[0].mxu0
    %658 = vmatprep.mubr.f32.mxu0 0.0
    %659 = vmatmul.mubr.f32.gmra.mrb[0].mxu0 %v579
    %v660 = vpop.f32.mrb[0].mxu0
    %v661 = vadd.f32 %v571, %v660
    %v662 = vpop.f32.mrb[0].mxu0
    %663 = vdwg.mxu0
    %v664 = vmax.f32 %v651, 0.0
    %v665 = vmax.f32 %v656, 0.0
    %v666 = vmax.f32 %v661, 0.0
    %v668 = vrot.slane %v664, 1
    %669 = vrot.lane.b32.xlu0 %v668, 10
    %v670 = vpop.permute.xlu0 %669
    %v672 = vrot.slane %v664, 2
    %673 = vrot.lane.b32.xlu0 %v672, 20
    %v674 = vpop.permute.xlu0 %673
    %v676 = vrot.slane %v664, 3
    %677 = vrot.lane.b32.xlu0 %v676, 30
    %v678 = vpop.permute.xlu0 %677
    %v680 = vrot.slane %v664, 4
    %681 = vrot.lane.b32.xlu0 %v680, 40
    %v682 = vpop.permute.xlu0 %681
    %v684 = vrot.slane %v664, 5
    %685 = vrot.lane.b32.xlu0 %v684, 50
    %v686 = vpop.permute.xlu0 %685
    %v688 = vrot.slane %v664, 6
    %689 = vrot.lane.b32.xlu0 %v688, 60
    %v690 = vpop.permute.xlu0 %689
    %v692 = vrot.slane %v664, 7
    %693 = vrot.lane.b32.xlu0 %v692, 70
    %v694 = vpop.permute.xlu0 %693
    %697 = vrot.lane.b32.xlu0 %v665, 80
    %v698 = vpop.permute.xlu0 %697
    %v700 = vrot.slane %v665, 1
    %701 = vrot.lane.b32.xlu0 %v700, 90
    %v702 = vpop.permute.xlu0 %701
    %v704 = vrot.slane %v665, 2
    %705 = vrot.lane.b32.xlu0 %v704, 100
    %v706 = vpop.permute.xlu0 %705
    %vm708 = vcmask 80896
    %v709 = vsel %vm708, %v664, %v670
    %v710 = vsel %vm328, %v709, %v674
    %vm711 = vcmask 244736
    %v712 = vsel %vm711, %v710, %v678
    %vm713 = vcmask 326656
    %v714 = vsel %vm713, %v712, %v682
    %vm715 = vcmask 408576
    %v716 = vsel %vm715, %v714, %v686
    %vm717 = vcmask 490496
    %v718 = vsel %vm717, %v716, %v690
    %vm719 = vcmask 572416
    %v720 = vsel %vm719, %v718, %v694
    %vm721 = vcmask 654336
    %v722 = vsel %vm721, %v720, %v698
    %vm723 = vcmask 736256
    %v724 = vsel %vm723, %v722, %v702
    %vm725 = vcmask 818176
    %v726 = vsel %vm725, %v724, %v706
    %727 = vrot.lane.b32.xlu0 %v700, 10
    %v728 = vpop.permute.xlu0 %727
    %730 = vrot.lane.b32.xlu0 %v704, 20
    %v731 = vpop.permute.xlu0 %730
    %v733 = vrot.slane %v665, 3
    %734 = vrot.lane.b32.xlu0 %v733, 30
    %v735 = vpop.permute.xlu0 %734
    %v737 = vrot.slane %v665, 4
    %738 = vrot.lane.b32.xlu0 %v737, 40
    %v739 = vpop.permute.xlu0 %738
    %v742 = vrot.slane %v666, 5
    %743 = vrot.lane.b32.xlu0 %v742, 50
    %v744 = vpop.permute.xlu0 %743
    %v746 = vrot.slane %v666, 6
    %747 = vrot.lane.b32.xlu0 %v746, 60
    %v748 = vpop.permute.xlu0 %747
    %v750 = vrot.slane %v666, 7
    %751 = vrot.lane.b32.xlu0 %v750, 70
    %v752 = vpop.permute.xlu0 %751
    %754 = vrot.lane.b32.xlu0 %v666, 80
    %v755 = vpop.permute.xlu0 %754
    %v757 = vrot.slane %v666, 1
    %758 = vrot.lane.b32.xlu0 %v757, 90
    %v759 = vpop.permute.xlu0 %758
    %v761 = vrot.slane %v666, 2
    %762 = vrot.lane.b32.xlu0 %v761, 100
    %v763 = vpop.permute.xlu0 %762
    %v765 = vsel %vm708, %v665, %v728
    %v766 = vsel %vm328, %v765, %v731
    %v767 = vsel %vm711, %v766, %v735
    %v768 = vsel %vm713, %v767, %v739
    %v769 = vsel %vm715, %v768, %v744
    %v770 = vsel %vm717, %v769, %v748
    %v771 = vsel %vm719, %v770, %v752
    %v772 = vsel %vm721, %v771, %v755
    %v773 = vsel %vm723, %v772, %v759
    %v774 = vsel %vm725, %v773, %v763
    %v776 = vrot.slane %v774, 2
    %vm778 = vcmask 1040384
    %v779 = vsel %vm778, %v726, %v776
    %v780 = vld [vmem:[%s1] sm:$0xff]
    %v781 = vld [vmem:[%s2] sm:$0xff]
    %783 = vrot.lane.b32.xlu0 %v781, 6
    %v784 = vpop.permute.xlu0 %783
    %v786 = vsel %vm572, %v780, %v784
    %s787 = scalar_lea.vmem %s1, 8
    %v788 = vld [vmem:[%s787] sm:$0xff]
    %s789 = scalar_lea.vmem %s2, 8
    %v790 = vld [vmem:[%s789] sm:$0xff]
    %792 = vrot.lane.b32.xlu0 %v790, 6
    %v793 = vpop.permute.xlu0 %792
    %v795 = vsel %vm572, %v788, %v793
    %v796 = vld [vmem:[#allocation2 + $0x50] sm:$0xff]
    %v797 = vld [vmem:[#allocation2 + $0x58] sm:$0x3]
    %v798 = vld [vmem:[#allocation2 + $0x60] sm:$0x1]
    %v799 = vlaneseq
    %v800 = vshrl.u32 %v799, 7
    %v801 = vsub.s32 0, %v800
    %v802 = vrot.slane %v798, %v801
    %v804 = vsel %vm708, %v786, 0
    %v807 = vsel %vm708, %v795, 0
    %v810 = vsel %vm38, %v797, 0
    %812 = vmatprep.subr.mxu0 0.0
    %813 = vmatpush1.msra.mxu0 %v796
    %814 = vmatprep.subr.mxu0 0.0
    %815 = vmatpush1.msra.mxu0 %v810
    %816 = vmatprep.subr.mxu0 0.0
    %817 = vmatpush1.msra.mxu0 0.0
    %818 = vmatprep.subr.mxu0 0.0
    %819 = vmatpush1.msra.mxu0 0.0
    %820 = vmatprep.subr.mxu0 0.0
    %821 = vmatpush1.msra.mxu0 0.0
    %822 = vmatprep.subr.mxu0 0.0
    %823 = vmatpush1.msra.mxu0 0.0
    %824 = vmatprep.subr.mxu0 0.0
    %825 = vmatpush1.msra.mxu0 0.0
    %826 = vmatprep.subr.mxu0 0.0
    %827 = vmatpush1.msra.mxu0 0.0
    %828 = vmatprep.subr.mxu0 0.0
    %829 = vmatpush1.msra.mxu0 0.0
    %830 = vmatprep.subr.mxu0 0.0
    %831 = vmatpush1.msra.mxu0 0.0
    %832 = vmatprep.subr.mxu0 0.0
    %833 = vmatpush1.msra.mxu0 0.0
    %834 = vmatprep.subr.mxu0 0.0
    %835 = vmatpush1.msra.mxu0 0.0
    %836 = vmatprep.subr.mxu0 0.0
    %837 = vmatpush1.msra.mxu0 0.0
    %838 = vmatprep.subr.mxu0 0.0
    %839 = vmatpush1.msra.mxu0 0.0
    %840 = vmatprep.subr.mxu0 0.0
    %841 = vmatpush1.msra.mxu0 0.0
    %842 = vmatprep.subr.mxu0 0.0
    %843 = vmatpush1.msra.mxu0 0.0
    %844 = vmatprep.subr.mxu0 0.0
    %845 = vmatpush1.msra.mxu0 0.0
    %846 = vmatprep.subr.mxu0 0.0
    %847 = vmatpush1.msra.mxu0 0.0
    %848 = vmatprep.subr.mxu0 0.0
    %849 = vmatpush1.msra.mxu0 0.0
    %850 = vmatprep.subr.mxu0 0.0
    %851 = vmatpush1.msra.mxu0 0.0
    %852 = vmatprep.subr.mxu0 0.0
    %853 = vmatpush1.msra.mxu0 0.0
    %854 = vmatprep.subr.mxu0 0.0
    %855 = vmatpush1.msra.mxu0 0.0
    %856 = vmatprep.subr.mxu0 0.0
    %857 = vmatpush1.msra.mxu0 0.0
    %858 = vmatprep.subr.mxu0 0.0
    %859 = vmatpush1.msra.mxu0 0.0
    %860 = vmatprep.subr.mxu0 0.0
    %861 = vmatpush1.msra.mxu0 0.0
    %862 = vmatprep.subr.mxu0 0.0
    %863 = vmatpush1.msra.mxu0 0.0
    %864 = vmatprep.subr.mxu0 0.0
    %865 = vmatpush1.msra.mxu0 0.0
    %866 = vmatprep.subr.mxu0 0.0
    %867 = vmatpush1.msra.mxu0 0.0
    %868 = vmatprep.subr.mxu0 0.0
    %869 = vmatpush1.msra.mxu0 0.0
    %870 = vmatprep.subr.mxu0 0.0
    %871 = vmatpush1.msra.mxu0 0.0
    %872 = vmatprep.subr.mxu0 0.0
    %873 = vmatpush1.msra.mxu0 0.0
    %874 = vmatprep.subr.mxu0 0.0
    %875 = vmatpush1.msra.mxu0 0.0
    %876 = vmatprep.mubr.f32.mxu0 0.0
    %877 = vmatmul.mubr.f32.gmra.mrb[0].mxu0 %v804
    %v878 = vpop.f32.mrb[0].mxu0
    %v879 = vadd.f32 %v802, %v878
    %v880 = vpop.f32.mrb[0].mxu0
    %881 = vmatprep.mubr.f32.mxu0 0.0
    %882 = vmatmul.mubr.f32.gmra.mrb[0].mxu0 %v807
    %v883 = vpop.f32.mrb[0].mxu0
    %v884 = vadd.f32 %v802, %v883
    %v885 = vpop.f32.mrb[0].mxu0
    %886 = vdwg.mxu0
    %v887 = vld [vmem:[#allocation2 + $0x68] sm:$0xff]
    %v888 = vld [vmem:[#allocation2 + $0x70] sm:$0x7f]
    %v889 = vld [vmem:[#allocation2 + $0x78] sm:$0x1]
    %v891 = vrot.slane %v884, 7
    %v893 = vsel %vm778, %v879, %v891
    %v894 = vlaneseq
    %v895 = vshrl.u32 %v894, 7
    %v896 = vsub.s32 0, %v895
    %v897 = vrot.slane %v889, %v896
    %vm898 = vcmask 121856
    %v900 = vsel %vm898, 0.0, 0
    %v903 = vsel %vm62, %v888, 0
    %905 = vmatprep.subr.mxu0 0.0
    %906 = vmatpush1.msra.mxu0 %v887
    %907 = vmatprep.subr.mxu0 0.0
    %908 = vmatpush1.msra.mxu0 %v903
    %909 = vmatprep.subr.mxu0 0.0
    %910 = vmatpush1.msra.mxu0 0.0
    %911 = vmatprep.subr.mxu0 0.0
    %912 = vmatpush1.msra.mxu0 0.0
    %913 = vmatprep.subr.mxu0 0.0
    %914 = vmatpush1.msra.mxu0 0.0
    %915 = vmatprep.subr.mxu0 0.0
    %916 = vmatpush1.msra.mxu0 0.0
    %917 = vmatprep.subr.mxu0 0.0
    %918 = vmatpush1.msra.mxu0 0.0
    %919 = vmatprep.subr.mxu0 0.0
    %920 = vmatpush1.msra.mxu0 0.0
    %921 = vmatprep.subr.mxu0 0.0
    %922 = vmatpush1.msra.mxu0 0.0
    %923 = vmatprep.subr.mxu0 0.0
    %924 = vmatpush1.msra.mxu0 0.0
    %925 = vmatprep.subr.mxu0 0.0
    %926 = vmatpush1.msra.mxu0 0.0
    %927 = vmatprep.subr.mxu0 0.0
    %928 = vmatpush1.msra.mxu0 0.0
    %929 = vmatprep.subr.mxu0 0.0
    %930 = vmatpush1.msra.mxu0 0.0
    %931 = vmatprep.subr.mxu0 0.0
    %932 = vmatpush1.msra.mxu0 0.0
    %933 = vmatprep.subr.mxu0 0.0
    %934 = vmatpush1.msra.mxu0 0.0
    %935 = vmatprep.subr.mxu0 0.0
    %936 = vmatpush1.msra.mxu0 0.0
    %937 = vmatprep.subr.mxu0 0.0
    %938 = vmatpush1.msra.mxu0 0.0
    %939 = vmatprep.subr.mxu0 0.0
    %940 = vmatpush1.msra.mxu0 0.0
    %941 = vmatprep.subr.mxu0 0.0
    %942 = vmatpush1.msra.mxu0 0.0
    %943 = vmatprep.subr.mxu0 0.0
    %944 = vmatpush1.msra.mxu0 0.0
    %945 = vmatprep.subr.mxu0 0.0
    %946 = vmatpush1.msra.mxu0 0.0
    %947 = vmatprep.subr.mxu0 0.0
    %948 = vmatpush1.msra.mxu0 0.0
    %949 = vmatprep.subr.mxu0 0.0
    %950 = vmatpush1.msra.mxu0 0.0
    %951 = vmatprep.subr.mxu0 0.0
    %952 = vmatpush1.msra.mxu0 0.0
    %953 = vmatprep.subr.mxu0 0.0
    %954 = vmatpush1.msra.mxu0 0.0
    %955 = vmatprep.subr.mxu0 0.0
    %956 = vmatpush1.msra.mxu0 0.0
    %957 = vmatprep.subr.mxu0 0.0
    %958 = vmatpush1.msra.mxu0 0.0
    %959 = vmatprep.subr.mxu0 0.0
    %960 = vmatpush1.msra.mxu0 0.0
    %961 = vmatprep.subr.mxu0 0.0
    %962 = vmatpush1.msra.mxu0 0.0
    %963 = vmatprep.subr.mxu0 0.0
    %964 = vmatpush1.msra.mxu0 0.0
    %965 = vmatprep.subr.mxu0 0.0
    %966 = vmatpush1.msra.mxu0 0.0
    %967 = vmatprep.subr.mxu0 0.0
    %968 = vmatpush1.msra.mxu0 0.0
    %969 = vmatprep.mubr.f32.mxu0 0.0
    %970 = vmatmul.mubr.f32.gmra.mrb[0].mxu0 %v900
    %v971 = vpop.f32.mrb[0].mxu0
    %v972 = vadd.f32 %v897, %v971
    %v973 = vpop.f32.mrb[0].mxu0
    %974 = vdwg.mxu0
    %v975 = vadd.f32 %v893, %v972
    %v976 = vxor.u32 %v975, 2147483648
    %v977 = vmul.f32 %v976, 1.442695
    %v978 = vpow.pop %v977
    %v979 = vadd.f32 %v978, 1.0
    %v980 = vrcp.pop %v979
    %v981 = vmul.f32 1.0, %v980
    %983 = vrot.lane.b32.xlu0 %v972, 98
    %v984 = vpop.permute.xlu0 %983
    %v986 = vmul.f32 %v981, %v984
    %988 = vrot.lane.b32.xlu0 %v986, 30
    %v989 = vpop.permute.xlu0 %988
    %v991 = vadd.f32 %v893, %v989
    %v992 = vtanh.pop %v991
    %v993 = vsub.f32 1.0, %v981
    %995 = vrot.lane.b32.xlu0 %v992, 113
    %v996 = vpop.permute.xlu0 %995
    %v998 = vmul.f32 %v993, %v996
    %v999 = vmul.f32 %v981, 0.0
    %v1000 = vadd.f32 %v998, %v999
    %v1002 = vrot.slane %v879, 1
    %v1004 = vsel %vm778, %v1002, %v884
    %1006 = vrot.lane.b32.xlu0 %v1000, 113
    %v1007 = vpop.permute.xlu0 %1006
    %v1008 = vsel %vm898, %v1007, 0
    %1010 = vmatprep.subr.mxu0 0.0
    %1011 = vmatpush1.msra.mxu0 %v887
    %1012 = vmatprep.subr.mxu0 0.0
    %1013 = vmatpush1.msra.mxu0 %v903
    %1014 = vmatprep.subr.mxu0 0.0
    %1015 = vmatpush1.msra.mxu0 0.0
    %1016 = vmatprep.subr.mxu0 0.0
    %1017 = vmatpush1.msra.mxu0 0.0
    %1018 = vmatprep.subr.mxu0 0.0
    %1019 = vmatpush1.msra.mxu0 0.0
    %1020 = vmatprep.subr.mxu0 0.0
    %1021 = vmatpush1.msra.mxu0 0.0
    %1022 = vmatprep.subr.mxu0 0.0
    %1023 = vmatpush1.msra.mxu0 0.0
    %1024 = vmatprep.subr.mxu0 0.0
    %1025 = vmatpush1.msra.mxu0 0.0
    %1026 = vmatprep.subr.mxu0 0.0
    %1027 = vmatpush1.msra.mxu0 0.0
    %1028 = vmatprep.subr.mxu0 0.0
    %1029 = vmatpush1.msra.mxu0 0.0
    %1030 = vmatprep.subr.mxu0 0.0
    %1031 = vmatpush1.msra.mxu0 0.0
    %1032 = vmatprep.subr.mxu0 0.0
    %1033 = vmatpush1.msra.mxu0 0.0
    %1034 = vmatprep.subr.mxu0 0.0
    %1035 = vmatpush1.msra.mxu0 0.0
    %1036 = vmatprep.subr.mxu0 0.0
    %1037 = vmatpush1.msra.mxu0 0.0
    %1038 = vmatprep.subr.mxu0 0.0
    %1039 = vmatpush1.msra.mxu0 0.0
    %1040 = vmatprep.subr.mxu0 0.0
    %1041 = vmatpush1.msra.mxu0 0.0
    %1042 = vmatprep.subr.mxu0 0.0
    %1043 = vmatpush1.msra.mxu0 0.0
    %1044 = vmatprep.subr.mxu0 0.0
    %1045 = vmatpush1.msra.mxu0 0.0
    %1046 = vmatprep.subr.mxu0 0.0
    %1047 = vmatpush1.msra.mxu0 0.0
    %1048 = vmatprep.subr.mxu0 0.0
    %1049 = vmatpush1.msra.mxu0 0.0
    %1050 = vmatprep.subr.mxu0 0.0
    %1051 = vmatpush1.msra.mxu0 0.0
    %1052 = vmatprep.subr.mxu0 0.0
    %1053 = vmatpush1.msra.mxu0 0.0
    %1054 = vmatprep.subr.mxu0 0.0
    %1055 = vmatpush1.msra.mxu0 0.0
    %1056 = vmatprep.subr.mxu0 0.0
    %1057 = vmatpush1.msra.mxu0 0.0
    %1058 = vmatprep.subr.mxu0 0.0
    %1059 = vmatpush1.msra.mxu0 0.0
    %1060 = vmatprep.subr.mxu0 0.0
    %1061 = vmatpush1.msra.mxu0 0.0
    %1062 = vmatprep.subr.mxu0 0.0
    %1063 = vmatpush1.msra.mxu0 0.0
    %1064 = vmatprep.subr.mxu0 0.0
    %1065 = vmatpush1.msra.mxu0 0.0
    %1066 = vmatprep.subr.mxu0 0.0
    %1067 = vmatpush1.msra.mxu0 0.0
    %1068 = vmatprep.subr.mxu0 0.0
    %1069 = vmatpush1.msra.mxu0 0.0
    %1070 = vmatprep.subr.mxu0 0.0
    %1071 = vmatpush1.msra.mxu0 0.0
    %1072 = vmatprep.subr.mxu0 0.0
    %1073 = vmatpush1.msra.mxu0 0.0
    %1074 = vmatprep.mubr.f32.mxu0 0.0
    %1075 = vmatmul.mubr.f32.gmra.mrb[0].mxu0 %v1008
    %v1076 = vpop.f32.mrb[0].mxu0
    %v1077 = vadd.f32 %v897, %v1076
    %v1078 = vpop.f32.mrb[0].mxu0
    %1079 = vdwg.mxu0
    %v1080 = vadd.f32 %v1004, %v1077
    %v1081 = vxor.u32 %v1080, 2147483648
    %v1082 = vmul.f32 %v1081, 1.442695
    %v1083 = vpow.pop %v1082
    %v1084 = vadd.f32 %v1083, 1.0
    %v1085 = vrcp.pop %v1084
    %v1086 = vmul.f32 1.0, %v1085
    %1088 = vrot.lane.b32.xlu0 %v1077, 98
    %v1089 = vpop.permute.xlu0 %1088
    %v1091 = vmul.f32 %v1086, %v1089
    %1093 = vrot.lane.b32.xlu0 %v1091, 30
    %v1094 = vpop.permute.xlu0 %1093
    %v1096 = vadd.f32 %v1004, %v1094
    %v1097 = vtanh.pop %v1096
    %v1098 = vsub.f32 1.0, %v1086
    %1100 = vrot.lane.b32.xlu0 %v1097, 113
    %v1101 = vpop.permute.xlu0 %1100
    %v1103 = vmul.f32 %v1098, %v1101
    %v1104 = vmul.f32 %v1086, %v1000
    %v1105 = vadd.f32 %v1103, %v1104
    %v1106 = vrot.slane %v879, 2
    %v1108 = vrot.slane %v884, 1
    %v1110 = vsel %vm778, %v1106, %v1108
    %1112 = vrot.lane.b32.xlu0 %v1105, 113
    %v1113 = vpop.permute.xlu0 %1112
    %v1114 = vsel %vm898, %v1113, 0
    %1116 = vmatprep.subr.mxu0 0.0
    %1117 = vmatpush1.msra.mxu0 %v887
    %1118 = vmatprep.subr.mxu0 0.0
    %1119 = vmatpush1.msra.mxu0 %v903
    %1120 = vmatprep.subr.mxu0 0.0
    %1121 = vmatpush1.msra.mxu0 0.0
    %1122 = vmatprep.subr.mxu0 0.0
    %1123 = vmatpush1.msra.mxu0 0.0
    %1124 = vmatprep.subr.mxu0 0.0
    %1125 = vmatpush1.msra.mxu0 0.0
    %1126 = vmatprep.subr.mxu0 0.0
    %1127 = vmatpush1.msra.mxu0 0.0
    %1128 = vmatprep.subr.mxu0 0.0
    %1129 = vmatpush1.msra.mxu0 0.0
    %1130 = vmatprep.subr.mxu0 0.0
    %1131 = vmatpush1.msra.mxu0 0.0
    %1132 = vmatprep.subr.mxu0 0.0
    %1133 = vmatpush1.msra.mxu0 0.0
    %1134 = vmatprep.subr.mxu0 0.0
    %1135 = vmatpush1.msra.mxu0 0.0
    %1136 = vmatprep.subr.mxu0 0.0
    %1137 = vmatpush1.msra.mxu0 0.0
    %1138 = vmatprep.subr.mxu0 0.0
    %1139 = vmatpush1.msra.mxu0 0.0
    %1140 = vmatprep.subr.mxu0 0.0
    %1141 = vmatpush1.msra.mxu0 0.0
    %1142 = vmatprep.subr.mxu0 0.0
    %1143 = vmatpush1.msra.mxu0 0.0
    %1144 = vmatprep.subr.mxu0 0.0
    %1145 = vmatpush1.msra.mxu0 0.0
    %1146 = vmatprep.subr.mxu0 0.0
    %1147 = vmatpush1.msra.mxu0 0.0
    %1148 = vmatprep.subr.mxu0 0.0
    %1149 = vmatpush1.msra.mxu0 0.0
    %1150 = vmatprep.subr.mxu0 0.0
    %1151 = vmatpush1.msra.mxu0 0.0
    %1152 = vmatprep.subr.mxu0 0.0
    %1153 = vmatpush1.msra.mxu0 0.0
    %1154 = vmatprep.subr.mxu0 0.0
    %1155 = vmatpush1.msra.mxu0 0.0
    %1156 = vmatprep.subr.mxu0 0.0
    %1157 = vmatpush1.msra.mxu0 0.0
    %1158 = vmatprep.subr.mxu0 0.0
    %1159 = vmatpush1.msra.mxu0 0.0
    %1160 = vmatprep.subr.mxu0 0.0
    %1161 = vmatpush1.msra.mxu0 0.0
    %1162 = vmatprep.subr.mxu0 0.0
    %1163 = vmatpush1.msra.mxu0 0.0
    %1164 = vmatprep.subr.mxu0 0.0
    %1165 = vmatpush1.msra.mxu0 0.0
    %1166 = vmatprep.subr.mxu0 0.0
    %1167 = vmatpush1.msra.mxu0 0.0
    %1168 = vmatprep.subr.mxu0 0.0
    %1169 = vmatpush1.msra.mxu0 0.0
    %1170 = vmatprep.subr.mxu0 0.0
    %1171 = vmatpush1.msra.mxu0 0.0
    %1172 = vmatprep.subr.mxu0 0.0
    %1173 = vmatpush1.msra.mxu0 0.0
    %1174 = vmatprep.subr.mxu0 0.0
    %1175 = vmatpush1.msra.mxu0 0.0
    %1176 = vmatprep.subr.mxu0 0.0
    %1177 = vmatpush1.msra.mxu0 0.0
    %1178 = vmatprep.subr.mxu0 0.0
    %1179 = vmatpush1.msra.mxu0 0.0
    %1180 = vmatprep.mubr.f32.mxu0 0.0
    %1181 = vmatmul.mubr.f32.gmra.mrb[0].mxu0 %v1114
    %v1182 = vpop.f32.mrb[0].mxu0
    %v1183 = vadd.f32 %v897, %v1182
    %v1184 = vpop.f32.mrb[0].mxu0
    %1185 = vdwg.mxu0
    %v1186 = vadd.f32 %v1110, %v1183
    %v1187 = vxor.u32 %v1186, 2147483648
    %v1188 = vmul.f32 %v1187, 1.442695
    %v1189 = vpow.pop %v1188
    %v1190 = vadd.f32 %v1189, 1.0
    %v1191 = vrcp.pop %v1190
    %v1192 = vmul.f32 1.0, %v1191
    %1194 = vrot.lane.b32.xlu0 %v1183, 98
    %v1195 = vpop.permute.xlu0 %1194
    %v1197 = vmul.f32 %v1192, %v1195
    %1199 = vrot.lane.b32.xlu0 %v1197, 30
    %v1200 = vpop.permute.xlu0 %1199
    %v1202 = vadd.f32 %v1110, %v1200
    %v1203 = vtanh.pop %v1202
    %v1204 = vsub.f32 1.0, %v1192
    %1206 = vrot.lane.b32.xlu0 %v1203, 113
    %v1207 = vpop.permute.xlu0 %1206
    %v1209 = vmul.f32 %v1204, %v1207
    %v1210 = vmul.f32 %v1192, %v1105
    %v1211 = vadd.f32 %v1209, %v1210
    %v1212 = vrot.slane %v879, 3
    %v1214 = vrot.slane %v884, 2
    %v1216 = vsel %vm778, %v1212, %v1214
    %1218 = vrot.lane.b32.xlu0 %v1211, 113
    %v1219 = vpop.permute.xlu0 %1218
    %v1220 = vsel %vm898, %v1219, 0
    %1222 = vmatprep.subr.mxu0 0.0
    %1223 = vmatpush1.msra.mxu0 %v887
    %1224 = vmatprep.subr.mxu0 0.0
    %1225 = vmatpush1.msra.mxu0 %v903
    %1226 = vmatprep.subr.mxu0 0.0
    %1227 = vmatpush1.msra.mxu0 0.0
    %1228 = vmatprep.subr.mxu0 0.0
    %1229 = vmatpush1.msra.mxu0 0.0
    %1230 = vmatprep.subr.mxu0 0.0
    %1231 = vmatpush1.msra.mxu0 0.0
    %1232 = vmatprep.subr.mxu0 0.0
    %1233 = vmatpush1.msra.mxu0 0.0
    %1234 = vmatprep.subr.mxu0 0.0
    %1235 = vmatpush1.msra.mxu0 0.0
    %1236 = vmatprep.subr.mxu0 0.0
    %1237 = vmatpush1.msra.mxu0 0.0
    %1238 = vmatprep.subr.mxu0 0.0
    %1239 = vmatpush1.msra.mxu0 0.0
    %1240 = vmatprep.subr.mxu0 0.0
    %1241 = vmatpush1.msra.mxu0 0.0
    %1242 = vmatprep.subr.mxu0 0.0
    %1243 = vmatpush1.msra.mxu0 0.0
    %1244 = vmatprep.subr.mxu0 0.0
    %1245 = vmatpush1.msra.mxu0 0.0
    %1246 = vmatprep.subr.mxu0 0.0
    %1247 = vmatpush1.msra.mxu0 0.0
    %1248 = vmatprep.subr.mxu0 0.0
    %1249 = vmatpush1.msra.mxu0 0.0
    %1250 = vmatprep.subr.mxu0 0.0
    %1251 = vmatpush1.msra.mxu0 0.0
    %1252 = vmatprep.subr.mxu0 0.0
    %1253 = vmatpush1.msra.mxu0 0.0
    %1254 = vmatprep.subr.mxu0 0.0
    %1255 = vmatpush1.msra.mxu0 0.0
    %1256 = vmatprep.subr.mxu0 0.0
    %1257 = vmatpush1.msra.mxu0 0.0
    %1258 = vmatprep.subr.mxu0 0.0
    %1259 = vmatpush1.msra.mxu0 0.0
    %1260 = vmatprep.subr.mxu0 0.0
    %1261 = vmatpush1.msra.mxu0 0.0
    %1262 = vmatprep.subr.mxu0 0.0
    %1263 = vmatpush1.msra.mxu0 0.0
    %1264 = vmatprep.subr.mxu0 0.0
    %1265 = vmatpush1.msra.mxu0 0.0
    %1266 = vmatprep.subr.mxu0 0.0
    %1267 = vmatpush1.msra.mxu0 0.0
    %1268 = vmatprep.subr.mxu0 0.0
    %1269 = vmatpush1.msra.mxu0 0.0
    %1270 = vmatprep.subr.mxu0 0.0
    %1271 = vmatpush1.msra.mxu0 0.0
    %1272 = vmatprep.subr.mxu0 0.0
    %1273 = vmatpush1.msra.mxu0 0.0
    %1274 = vmatprep.subr.mxu0 0.0
    %1275 = vmatpush1.msra.mxu0 0.0
    %1276 = vmatprep.subr.mxu0 0.0
    %1277 = vmatpush1.msra.mxu0 0.0
    %1278 = vmatprep.subr.mxu0 0.0
    %1279 = vmatpush1.msra.mxu0 0.0
    %1280 = vmatprep.subr.mxu0 0.0
    %1281 = vmatpush1.msra.mxu0 0.0
    %1282 = vmatprep.subr.mxu0 0.0
    %1283 = vmatpush1.msra.mxu0 0.0
    %1284 = vmatprep.subr.mxu0 0.0
    %1285 = vmatpush1.msra.mxu0 0.0
    %1286 = vmatprep.mubr.f32.mxu0 0.0
    %1287 = vmatmul.mubr.f32.gmra.mrb[0].mxu0 %v1220
    %v1288 = vpop.f32.mrb[0].mxu0
    %v1289 = vadd.f32 %v897, %v1288
    %v1290 = vpop.f32.mrb[0].mxu0
    %1291 = vdwg.mxu0
    %v1292 = vadd.f32 %v1216, %v1289
    %v1293 = vxor.u32 %v1292, 2147483648
    %v1294 = vmul.f32 %v1293, 1.442695
    %v1295 = vpow.pop %v1294
    %v1296 = vadd.f32 %v1295, 1.0
    %v1297 = vrcp.pop %v1296
    %v1298 = vmul.f32 1.0, %v1297
    %1300 = vrot.lane.b32.xlu0 %v1289, 98
    %v1301 = vpop.permute.xlu0 %1300
    %v1303 = vmul.f32 %v1298, %v1301
    %1305 = vrot.lane.b32.xlu0 %v1303, 30
    %v1306 = vpop.permute.xlu0 %1305
    %v1308 = vadd.f32 %v1216, %v1306
    %v1309 = vtanh.pop %v1308
    %v1310 = vsub.f32 1.0, %v1298
    %1312 = vrot.lane.b32.xlu0 %v1309, 113
    %v1313 = vpop.permute.xlu0 %1312
    %v1315 = vmul.f32 %v1310, %v1313
    %v1316 = vmul.f32 %v1298, %v1211
    %v1317 = vadd.f32 %v1315, %v1316
    %v1318 = vrot.slane %v879, 4
    %v1320 = vrot.slane %v884, 3
    %v1322 = vsel %vm778, %v1318, %v1320
    %1324 = vrot.lane.b32.xlu0 %v1317, 113
    %v1325 = vpop.permute.xlu0 %1324
    %v1326 = vsel %vm898, %v1325, 0
    %1328 = vmatprep.subr.mxu0 0.0
    %1329 = vmatpush1.msra.mxu0 %v887
    %1330 = vmatprep.subr.mxu0 0.0
    %1331 = vmatpush1.msra.mxu0 %v903
    %1332 = vmatprep.subr.mxu0 0.0
    %1333 = vmatpush1.msra.mxu0 0.0
    %1334 = vmatprep.subr.mxu0 0.0
    %1335 = vmatpush1.msra.mxu0 0.0
    %1336 = vmatprep.subr.mxu0 0.0
    %1337 = vmatpush1.msra.mxu0 0.0
    %1338 = vmatprep.subr.mxu0 0.0
    %1339 = vmatpush1.msra.mxu0 0.0
    %1340 = vmatprep.subr.mxu0 0.0
    %1341 = vmatpush1.msra.mxu0 0.0
    %1342 = vmatprep.subr.mxu0 0.0
    %1343 = vmatpush1.msra.mxu0 0.0
    %1344 = vmatprep.subr.mxu0 0.0
    %1345 = vmatpush1.msra.mxu0 0.0
    %1346 = vmatprep.subr.mxu0 0.0
    %1347 = vmatpush1.msra.mxu0 0.0
    %1348 = vmatprep.subr.mxu0 0.0
    %1349 = vmatpush1.msra.mxu0 0.0
    %1350 = vmatprep.subr.mxu0 0.0
    %1351 = vmatpush1.msra.mxu0 0.0
    %1352 = vmatprep.subr.mxu0 0.0
    %1353 = vmatpush1.msra.mxu0 0.0
    %1354 = vmatprep.subr.mxu0 0.0
    %1355 = vmatpush1.msra.mxu0 0.0
    %1356 = vmatprep.subr.mxu0 0.0
    %1357 = vmatpush1.msra.mxu0 0.0
    %1358 = vmatprep.subr.mxu0 0.0
    %1359 = vmatpush1.msra.mxu0 0.0
    %1360 = vmatprep.subr.mxu0 0.0
    %1361 = vmatpush1.msra.mxu0 0.0
    %1362 = vmatprep.subr.mxu0 0.0
    %1363 = vmatpush1.msra.mxu0 0.0
    %1364 = vmatprep.subr.mxu0 0.0
    %1365 = vmatpush1.msra.mxu0 0.0
    %1366 = vmatprep.subr.mxu0 0.0
    %1367 = vmatpush1.msra.mxu0 0.0
    %1368 = vmatprep.subr.mxu0 0.0
    %1369 = vmatpush1.msra.mxu0 0.0
    %1370 = vmatprep.subr.mxu0 0.0
    %1371 = vmatpush1.msra.mxu0 0.0
    %1372 = vmatprep.subr.mxu0 0.0
    %1373 = vmatpush1.msra.mxu0 0.0
    %1374 = vmatprep.subr.mxu0 0.0
    %1375 = vmatpush1.msra.mxu0 0.0
    %1376 = vmatprep.subr.mxu0 0.0
    %1377 = vmatpush1.msra.mxu0 0.0
    %1378 = vmatprep.subr.mxu0 0.0
    %1379 = vmatpush1.msra.mxu0 0.0
    %1380 = vmatprep.subr.mxu0 0.0
    %1381 = vmatpush1.msra.mxu0 0.0
    %1382 = vmatprep.subr.mxu0 0.0
    %1383 = vmatpush1.msra.mxu0 0.0
    %1384 = vmatprep.subr.mxu0 0.0
    %1385 = vmatpush1.msra.mxu0 0.0
    %1386 = vmatprep.subr.mxu0 0.0
    %1387 = vmatpush1.msra.mxu0 0.0
    %1388 = vmatprep.subr.mxu0 0.0
    %1389 = vmatpush1.msra.mxu0 0.0
    %1390 = vmatprep.subr.mxu0 0.0
    %1391 = vmatpush1.msra.mxu0 0.0
    %1392 = vmatprep.mubr.f32.mxu0 0.0
    %1393 = vmatmul.mubr.f32.gmra.mrb[0].mxu0 %v1326
    %v1394 = vpop.f32.mrb[0].mxu0
    %v1395 = vadd.f32 %v897, %v1394
    %v1396 = vpop.f32.mrb[0].mxu0
    %1397 = vdwg.mxu0
    %v1398 = vadd.f32 %v1322, %v1395
    %v1399 = vxor.u32 %v1398, 2147483648
    %v1400 = vmul.f32 %v1399, 1.442695
    %v1401 = vpow.pop %v1400
    %v1402 = vadd.f32 %v1401, 1.0
    %v1403 = vrcp.pop %v1402
    %v1404 = vmul.f32 1.0, %v1403
    %1406 = vrot.lane.b32.xlu0 %v1395, 98
    %v1407 = vpop.permute.xlu0 %1406
    %v1409 = vmul.f32 %v1404, %v1407
    %1411 = vrot.lane.b32.xlu0 %v1409, 30
    %v1412 = vpop.permute.xlu0 %1411
    %v1414 = vadd.f32 %v1322, %v1412
    %v1415 = vtanh.pop %v1414
    %v1416 = vsub.f32 1.0, %v1404
    %1418 = vrot.lane.b32.xlu0 %v1415, 113
    %v1419 = vpop.permute.xlu0 %1418
    %v1421 = vmul.f32 %v1416, %v1419
    %v1422 = vmul.f32 %v1404, %v1317
    %v1423 = vadd.f32 %v1421, %v1422
    %v1424 = vrot.slane %v879, 5
    %v1426 = vrot.slane %v884, 4
    %v1428 = vsel %vm778, %v1424, %v1426
    %1430 = vrot.lane.b32.xlu0 %v1423, 113
    %v1431 = vpop.permute.xlu0 %1430
    %v1432 = vsel %vm898, %v1431, 0
    %1434 = vmatprep.subr.mxu0 0.0
    %1435 = vmatpush1.msra.mxu0 %v887
    %1436 = vmatprep.subr.mxu0 0.0
    %1437 = vmatpush1.msra.mxu0 %v903
    %1438 = vmatprep.subr.mxu0 0.0
    %1439 = vmatpush1.msra.mxu0 0.0
    %1440 = vmatprep.subr.mxu0 0.0
    %1441 = vmatpush1.msra.mxu0 0.0
    %1442 = vmatprep.subr.mxu0 0.0
    %1443 = vmatpush1.msra.mxu0 0.0
    %1444 = vmatprep.subr.mxu0 0.0
    %1445 = vmatpush1.msra.mxu0 0.0
    %1446 = vmatprep.subr.mxu0 0.0
    %1447 = vmatpush1.msra.mxu0 0.0
    %1448 = vmatprep.subr.mxu0 0.0
    %1449 = vmatpush1.msra.mxu0 0.0
    %1450 = vmatprep.subr.mxu0 0.0
    %1451 = vmatpush1.msra.mxu0 0.0
    %1452 = vmatprep.subr.mxu0 0.0
    %1453 = vmatpush1.msra.mxu0 0.0
    %1454 = vmatprep.subr.mxu0 0.0
    %1455 = vmatpush1.msra.mxu0 0.0
    %1456 = vmatprep.subr.mxu0 0.0
    %1457 = vmatpush1.msra.mxu0 0.0
    %1458 = vmatprep.subr.mxu0 0.0
    %1459 = vmatpush1.msra.mxu0 0.0
    %1460 = vmatprep.subr.mxu0 0.0
    %1461 = vmatpush1.msra.mxu0 0.0
    %1462 = vmatprep.subr.mxu0 0.0
    %1463 = vmatpush1.msra.mxu0 0.0
    %1464 = vmatprep.subr.mxu0 0.0
    %1465 = vmatpush1.msra.mxu0 0.0
    %1466 = vmatprep.subr.mxu0 0.0
    %1467 = vmatpush1.msra.mxu0 0.0
    %1468 = vmatprep.subr.mxu0 0.0
    %1469 = vmatpush1.msra.mxu0 0.0
    %1470 = vmatprep.subr.mxu0 0.0
    %1471 = vmatpush1.msra.mxu0 0.0
    %1472 = vmatprep.subr.mxu0 0.0
    %1473 = vmatpush1.msra.mxu0 0.0
    %1474 = vmatprep.subr.mxu0 0.0
    %1475 = vmatpush1.msra.mxu0 0.0
    %1476 = vmatprep.subr.mxu0 0.0
    %1477 = vmatpush1.msra.mxu0 0.0
    %1478 = vmatprep.subr.mxu0 0.0
    %1479 = vmatpush1.msra.mxu0 0.0
    %1480 = vmatprep.subr.mxu0 0.0
    %1481 = vmatpush1.msra.mxu0 0.0
    %1482 = vmatprep.subr.mxu0 0.0
    %1483 = vmatpush1.msra.mxu0 0.0
    %1484 = vmatprep.subr.mxu0 0.0
    %1485 = vmatpush1.msra.mxu0 0.0
    %1486 = vmatprep.subr.mxu0 0.0
    %1487 = vmatpush1.msra.mxu0 0.0
    %1488 = vmatprep.subr.mxu0 0.0
    %1489 = vmatpush1.msra.mxu0 0.0
    %1490 = vmatprep.subr.mxu0 0.0
    %1491 = vmatpush1.msra.mxu0 0.0
    %1492 = vmatprep.subr.mxu0 0.0
    %1493 = vmatpush1.msra.mxu0 0.0
    %1494 = vmatprep.subr.mxu0 0.0
    %1495 = vmatpush1.msra.mxu0 0.0
    %1496 = vmatprep.subr.mxu0 0.0
    %1497 = vmatpush1.msra.mxu0 0.0
    %1498 = vmatprep.mubr.f32.mxu0 0.0
    %1499 = vmatmul.mubr.f32.gmra.mrb[0].mxu0 %v1432
    %v1500 = vpop.f32.mrb[0].mxu0
    %v1501 = vadd.f32 %v897, %v1500
    %v1502 = vpop.f32.mrb[0].mxu0
    %1503 = vdwg.mxu0
    %v1504 = vadd.f32 %v1428, %v1501
    %v1505 = vxor.u32 %v1504, 2147483648
    %v1506 = vmul.f32 %v1505, 1.442695
    %v1507 = vpow.pop %v1506
    %v1508 = vadd.f32 %v1507, 1.0
    %v1509 = vrcp.pop %v1508
    %v1510 = vmul.f32 1.0, %v1509
    %1512 = vrot.lane.b32.xlu0 %v1501, 98
    %v1513 = vpop.permute.xlu0 %1512
    %v1515 = vmul.f32 %v1510, %v1513
    %1517 = vrot.lane.b32.xlu0 %v1515, 30
    %v1518 = vpop.permute.xlu0 %1517
    %v1520 = vadd.f32 %v1428, %v1518
    %v1521 = vtanh.pop %v1520
    %v1522 = vsub.f32 1.0, %v1510
    %1524 = vrot.lane.b32.xlu0 %v1521, 113
    %v1525 = vpop.permute.xlu0 %1524
    %v1527 = vmul.f32 %v1522, %v1525
    %v1528 = vmul.f32 %v1510, %v1423
    %v1529 = vadd.f32 %v1527, %v1528
    %v1530 = vrot.slane %v879, 6
    %v1532 = vrot.slane %v884, 5
    %v1534 = vsel %vm778, %v1530, %v1532
    %1536 = vrot.lane.b32.xlu0 %v1529, 113
    %v1537 = vpop.permute.xlu0 %1536
    %v1538 = vsel %vm898, %v1537, 0
    %1540 = vmatprep.subr.mxu0 0.0
    %1541 = vmatpush1.msra.mxu0 %v887
    %1542 = vmatprep.subr.mxu0 0.0
    %1543 = vmatpush1.msra.mxu0 %v903
    %1544 = vmatprep.subr.mxu0 0.0
    %1545 = vmatpush1.msra.mxu0 0.0
    %1546 = vmatprep.subr.mxu0 0.0
    %1547 = vmatpush1.msra.mxu0 0.0
    %1548 = vmatprep.subr.mxu0 0.0
    %1549 = vmatpush1.msra.mxu0 0.0
    %1550 = vmatprep.subr.mxu0 0.0
    %1551 = vmatpush1.msra.mxu0 0.0
    %1552 = vmatprep.subr.mxu0 0.0
    %1553 = vmatpush1.msra.mxu0 0.0
    %1554 = vmatprep.subr.mxu0 0.0
    %1555 = vmatpush1.msra.mxu0 0.0
    %1556 = vmatprep.subr.mxu0 0.0
    %1557 = vmatpush1.msra.mxu0 0.0
    %1558 = vmatprep.subr.mxu0 0.0
    %1559 = vmatpush1.msra.mxu0 0.0
    %1560 = vmatprep.subr.mxu0 0.0
    %1561 = vmatpush1.msra.mxu0 0.0
    %1562 = vmatprep.subr.mxu0 0.0
    %1563 = vmatpush1.msra.mxu0 0.0
    %1564 = vmatprep.subr.mxu0 0.0
    %1565 = vmatpush1.msra.mxu0 0.0
    %1566 = vmatprep.subr.mxu0 0.0
    %1567 = vmatpush1.msra.mxu0 0.0
    %1568 = vmatprep.subr.mxu0 0.0
    %1569 = vmatpush1.msra.mxu0 0.0
    %1570 = vmatprep.subr.mxu0 0.0
    %1571 = vmatpush1.msra.mxu0 0.0
    %1572 = vmatprep.subr.mxu0 0.0
    %1573 = vmatpush1.msra.mxu0 0.0
    %1574 = vmatprep.subr.mxu0 0.0
    %1575 = vmatpush1.msra.mxu0 0.0
    %1576 = vmatprep.subr.mxu0 0.0
    %1577 = vmatpush1.msra.mxu0 0.0
    %1578 = vmatprep.subr.mxu0 0.0
    %1579 = vmatpush1.msra.mxu0 0.0
    %1580 = vmatprep.subr.mxu0 0.0
    %1581 = vmatpush1.msra.mxu0 0.0
    %1582 = vmatprep.subr.mxu0 0.0
    %1583 = vmatpush1.msra.mxu0 0.0
    %1584 = vmatprep.subr.mxu0 0.0
    %1585 = vmatpush1.msra.mxu0 0.0
    %1586 = vmatprep.subr.mxu0 0.0
    %1587 = vmatpush1.msra.mxu0 0.0
    %1588 = vmatprep.subr.mxu0 0.0
    %1589 = vmatpush1.msra.mxu0 0.0
    %1590 = vmatprep.subr.mxu0 0.0
    %1591 = vmatpush1.msra.mxu0 0.0
    %1592 = vmatprep.subr.mxu0 0.0
    %1593 = vmatpush1.msra.mxu0 0.0
    %1594 = vmatprep.subr.mxu0 0.0
    %1595 = vmatpush1.msra.mxu0 0.0
    %1596 = vmatprep.subr.mxu0 0.0
    %1597 = vmatpush1.msra.mxu0 0.0
    %1598 = vmatprep.subr.mxu0 0.0
    %1599 = vmatpush1.msra.mxu0 0.0
    %1600 = vmatprep.subr.mxu0 0.0
    %1601 = vmatpush1.msra.mxu0 0.0
    %1602 = vmatprep.subr.mxu0 0.0
    %1603 = vmatpush1.msra.mxu0 0.0
    %1604 = vmatprep.mubr.f32.mxu0 0.0
    %1605 = vmatmul.mubr.f32.gmra.mrb[0].mxu0 %v1538
    %v1606 = vpop.f32.mrb[0].mxu0
    %v1607 = vadd.f32 %v897, %v1606
    %v1608 = vpop.f32.mrb[0].mxu0
    %1609 = vdwg.mxu0
    %v1610 = vadd.f32 %v1534, %v1607
    %v1611 = vxor.u32 %v1610, 2147483648
    %v1612 = vmul.f32 %v1611, 1.442695
    %v1613 = vpow.pop %v1612
    %v1614 = vadd.f32 %v1613, 1.0
    %v1615 = vrcp.pop %v1614
    %v1616 = vmul.f32 1.0, %v1615
    %1618 = vrot.lane.b32.xlu0 %v1607, 98
    %v1619 = vpop.permute.xlu0 %1618
    %v1621 = vmul.f32 %v1616, %v1619
    %1623 = vrot.lane.b32.xlu0 %v1621, 30
    %v1624 = vpop.permute.xlu0 %1623
    %v1626 = vadd.f32 %v1534, %v1624
    %v1627 = vtanh.pop %v1626
    %v1628 = vsub.f32 1.0, %v1616
    %1630 = vrot.lane.b32.xlu0 %v1627, 113
    %v1631 = vpop.permute.xlu0 %1630
    %v1633 = vmul.f32 %v1628, %v1631
    %v1634 = vmul.f32 %v1616, %v1529
    %v1635 = vadd.f32 %v1633, %v1634
    %v1636 = vrot.slane %v879, 7
    %v1638 = vrot.slane %v884, 6
    %v1640 = vsel %vm778, %v1636, %v1638
    %1642 = vrot.lane.b32.xlu0 %v1635, 113
    %v1643 = vpop.permute.xlu0 %1642
    %v1644 = vsel %vm898, %v1643, 0
    %1646 = vmatprep.subr.mxu0 0.0
    %1647 = vmatpush1.msra.mxu0 %v887
    %1648 = vmatprep.subr.mxu0 0.0
    %1649 = vmatpush1.msra.mxu0 %v903
    %1650 = vmatprep.subr.mxu0 0.0
    %1651 = vmatpush1.msra.mxu0 0.0
    %1652 = vmatprep.subr.mxu0 0.0
    %1653 = vmatpush1.msra.mxu0 0.0
    %1654 = vmatprep.subr.mxu0 0.0
    %1655 = vmatpush1.msra.mxu0 0.0
    %1656 = vmatprep.subr.mxu0 0.0
    %1657 = vmatpush1.msra.mxu0 0.0
    %1658 = vmatprep.subr.mxu0 0.0
    %1659 = vmatpush1.msra.mxu0 0.0
    %1660 = vmatprep.subr.mxu0 0.0
    %1661 = vmatpush1.msra.mxu0 0.0
    %1662 = vmatprep.subr.mxu0 0.0
    %1663 = vmatpush1.msra.mxu0 0.0
    %1664 = vmatprep.subr.mxu0 0.0
    %1665 = vmatpush1.msra.mxu0 0.0
    %1666 = vmatprep.subr.mxu0 0.0
    %1667 = vmatpush1.msra.mxu0 0.0
    %1668 = vmatprep.subr.mxu0 0.0
    %1669 = vmatpush1.msra.mxu0 0.0
    %1670 = vmatprep.subr.mxu0 0.0
    %1671 = vmatpush1.msra.mxu0 0.0
    %1672 = vmatprep.subr.mxu0 0.0
    %1673 = vmatpush1.msra.mxu0 0.0
    %1674 = vmatprep.subr.mxu0 0.0
    %1675 = vmatpush1.msra.mxu0 0.0
    %1676 = vmatprep.subr.mxu0 0.0
    %1677 = vmatpush1.msra.mxu0 0.0
    %1678 = vmatprep.subr.mxu0 0.0
    %1679 = vmatpush1.msra.mxu0 0.0
    %1680 = vmatprep.subr.mxu0 0.0
    %1681 = vmatpush1.msra.mxu0 0.0
    %1682 = vmatprep.subr.mxu0 0.0
    %1683 = vmatpush1.msra.mxu0 0.0
    %1684 = vmatprep.subr.mxu0 0.0
    %1685 = vmatpush1.msra.mxu0 0.0
    %1686 = vmatprep.subr.mxu0 0.0
    %1687 = vmatpush1.msra.mxu0 0.0
    %1688 = vmatprep.subr.mxu0 0.0
    %1689 = vmatpush1.msra.mxu0 0.0
    %1690 = vmatprep.subr.mxu0 0.0
    %1691 = vmatpush1.msra.mxu0 0.0
    %1692 = vmatprep.subr.mxu0 0.0
    %1693 = vmatpush1.msra.mxu0 0.0
    %1694 = vmatprep.subr.mxu0 0.0
    %1695 = vmatpush1.msra.mxu0 0.0
    %1696 = vmatprep.subr.mxu0 0.0
    %1697 = vmatpush1.msra.mxu0 0.0
    %1698 = vmatprep.subr.mxu0 0.0
    %1699 = vmatpush1.msra.mxu0 0.0
    %1700 = vmatprep.subr.mxu0 0.0
    %1701 = vmatpush1.msra.mxu0 0.0
    %1702 = vmatprep.subr.mxu0 0.0
    %1703 = vmatpush1.msra.mxu0 0.0
    %1704 = vmatprep.subr.mxu0 0.0
    %1705 = vmatpush1.msra.mxu0 0.0
    %1706 = vmatprep.subr.mxu0 0.0
    %1707 = vmatpush1.msra.mxu0 0.0
    %1708 = vmatprep.subr.mxu0 0.0
    %1709 = vmatpush1.msra.mxu0 0.0
    %1710 = vmatprep.mubr.f32.mxu0 0.0
    %1711 = vmatmul.mubr.f32.gmra.mrb[0].mxu0 %v1644
    %v1712 = vpop.f32.mrb[0].mxu0
    %v1713 = vadd.f32 %v897, %v1712
    %v1714 = vpop.f32.mrb[0].mxu0
    %1715 = vdwg.mxu0
    %v1716 = vadd.f32 %v1640, %v1713
    %v1717 = vxor.u32 %v1716, 2147483648
    %v1718 = vmul.f32 %v1717, 1.442695
    %v1719 = vpow.pop %v1718
    %v1720 = vadd.f32 %v1719, 1.0
    %v1721 = vrcp.pop %v1720
    %v1722 = vmul.f32 1.0, %v1721
    %1724 = vrot.lane.b32.xlu0 %v1713, 98
    %v1725 = vpop.permute.xlu0 %1724
    %v1727 = vmul.f32 %v1722, %v1725
    %1729 = vrot.lane.b32.xlu0 %v1727, 30
    %v1730 = vpop.permute.xlu0 %1729
    %v1732 = vadd.f32 %v1640, %v1730
    %v1733 = vtanh.pop %v1732
    %v1734 = vsub.f32 1.0, %v1722
    %1736 = vrot.lane.b32.xlu0 %v1733, 113
    %v1737 = vpop.permute.xlu0 %1736
    %v1739 = vmul.f32 %v1734, %v1737
    %v1740 = vmul.f32 %v1722, %v1635
    %v1741 = vadd.f32 %v1739, %v1740
    %v1742 = vmax.f32 %v1741, 0.0
    %v1743 = vld [vmem:[%s3] sm:$0x3]
    %v1744 = vld [vmem:[#allocation2 + $0x80] sm:$0xff]
    %v1745 = vld [vmem:[#allocation2 + $0x88] sm:$0xff]
    %v1746 = vld [vmem:[#allocation2 + $0x90] sm:$0xff]
    %v1747 = vld [vmem:[#allocation2 + $0x98] sm:$0xff]
    %v1748 = vld [vmem:[#allocation2 + $0xa0] sm:$0xff]
    %v1749 = vld [vmem:[#allocation2 + $0xa8] sm:$0xff]
    %v1750 = vld [vmem:[#allocation2 + $0xb0] sm:$0xff]
    %v1751 = vld [vmem:[#allocation2 + $0xb8] sm:$0xff]
    %v1752 = vld [vmem:[#allocation2 + $0xc0] sm:$0xff]
    %v1753 = vld [vmem:[#allocation2 + $0xc8] sm:$0xff]
    %v1754 = vld [vmem:[#allocation2 + $0xd0] sm:$0xff]
    %v1755 = vld [vmem:[#allocation2 + $0xd8] sm:$0xff]
    %v1756 = vld [vmem:[#allocation2 + $0xe0] sm:$0xff]
    %v1757 = vld [vmem:[#allocation2 + $0xe8] sm:$0x3f]
    %v1758 = vld [vmem:[#allocation2 + $0xf0] sm:$0xff]
    %v1759 = vld [vmem:[#allocation2 + $0xf8] sm:$0x7f]
    %1761 = vrot.lane.b32.xlu0 %v1742, 113
    %v1762 = vpop.permute.xlu0 %1761
    %v1763 = vsel %vm898, %v1762, 0
    %v1766 = vsel %vm62, %v1759, 0
    %1768 = vmatprep.subr.mxu0 0.0
    %1769 = vmatpush1.msra.mxu0 %v1758
    %1770 = vmatprep.subr.mxu0 0.0
    %1771 = vmatpush1.msra.mxu0 %v1766
    %1772 = vmatprep.subr.mxu0 0.0
    %1773 = vmatpush1.msra.mxu0 0.0
    %1774 = vmatprep.subr.mxu0 0.0
    %1775 = vmatpush1.msra.mxu0 0.0
    %1776 = vmatprep.subr.mxu0 0.0
    %1777 = vmatpush1.msra.mxu0 0.0
    %1778 = vmatprep.subr.mxu0 0.0
    %1779 = vmatpush1.msra.mxu0 0.0
    %1780 = vmatprep.subr.mxu0 0.0
    %1781 = vmatpush1.msra.mxu0 0.0
    %1782 = vmatprep.subr.mxu0 0.0
    %1783 = vmatpush1.msra.mxu0 0.0
    %1784 = vmatprep.subr.mxu0 0.0
    %1785 = vmatpush1.msra.mxu0 0.0
    %1786 = vmatprep.subr.mxu0 0.0
    %1787 = vmatpush1.msra.mxu0 0.0
    %1788 = vmatprep.subr.mxu0 0.0
    %1789 = vmatpush1.msra.mxu0 0.0
    %1790 = vmatprep.subr.mxu0 0.0
    %1791 = vmatpush1.msra.mxu0 0.0
    %1792 = vmatprep.subr.mxu0 0.0
    %1793 = vmatpush1.msra.mxu0 0.0
    %1794 = vmatprep.subr.mxu0 0.0
    %1795 = vmatpush1.msra.mxu0 0.0
    %1796 = vmatprep.subr.mxu0 0.0
    %1797 = vmatpush1.msra.mxu0 0.0
    %1798 = vmatprep.subr.mxu0 0.0
    %1799 = vmatpush1.msra.mxu0 0.0
    %1800 = vmatprep.subr.mxu0 0.0
    %1801 = vmatpush1.msra.mxu0 0.0
    %1802 = vmatprep.subr.mxu0 0.0
    %1803 = vmatpush1.msra.mxu0 0.0
    %1804 = vmatprep.subr.mxu0 0.0
    %1805 = vmatpush1.msra.mxu0 0.0
    %1806 = vmatprep.subr.mxu0 0.0
    %1807 = vmatpush1.msra.mxu0 0.0
    %1808 = vmatprep.subr.mxu0 0.0
    %1809 = vmatpush1.msra.mxu0 0.0
    %1810 = vmatprep.subr.mxu0 0.0
    %1811 = vmatpush1.msra.mxu0 0.0
    %1812 = vmatprep.subr.mxu0 0.0
    %1813 = vmatpush1.msra.mxu0 0.0
    %1814 = vmatprep.subr.mxu0 0.0
    %1815 = vmatpush1.msra.mxu0 0.0
    %1816 = vmatprep.subr.mxu0 0.0
    %1817 = vmatpush1.msra.mxu0 0.0
    %1818 = vmatprep.subr.mxu0 0.0
    %1819 = vmatpush1.msra.mxu0 0.0
    %1820 = vmatprep.subr.mxu0 0.0
    %1821 = vmatpush1.msra.mxu0 0.0
    %1822 = vmatprep.subr.mxu0 0.0
    %1823 = vmatpush1.msra.mxu0 0.0
    %1824 = vmatprep.subr.mxu0 0.0
    %1825 = vmatpush1.msra.mxu0 0.0
    %1826 = vmatprep.subr.mxu0 0.0
    %1827 = vmatpush1.msra.mxu0 0.0
    %1828 = vmatprep.subr.mxu0 0.0
    %1829 = vmatpush1.msra.mxu0 0.0
    %1830 = vmatprep.subr.mxu0 0.0
    %1831 = vmatpush1.msra.mxu0 0.0
    %1832 = vmatprep.mubr.f32.mxu0 0.0
    %1833 = vmatmul.mubr.f32.gmra.mrb[0].mxu0 %v1763
    %v1834 = vpop.f32.mrb[0].mxu0
    %v1835 = vadd.f32 0.0, %v1834
    %v1836 = vpop.f32.mrb[0].mxu0
    %1837 = vdwg.mxu0
    %vm1838 = vcmask 900096
    %v1840 = vsel %vm1838, %v779, 0
    %v1843 = vsel %vm77, %v1757, 0
    %1845 = vmatprep.subr.mxu0 0.0
    %1846 = vmatpush1.msra.mxu0 %v1744
    %1847 = vmatprep.subr.mxu0 0.0
    %1848 = vmatpush1.msra.mxu0 %v1745
    %1849 = vmatprep.subr.mxu0 0.0
    %1850 = vmatpush1.msra.mxu0 %v1746
    %1851 = vmatprep.subr.mxu0 0.0
    %1852 = vmatpush1.msra.mxu0 %v1747
    %1853 = vmatprep.subr.mxu0 0.0
    %1854 = vmatpush1.msra.mxu0 %v1748
    %1855 = vmatprep.subr.mxu0 0.0
    %1856 = vmatpush1.msra.mxu0 %v1749
    %1857 = vmatprep.subr.mxu0 0.0
    %1858 = vmatpush1.msra.mxu0 %v1750
    %1859 = vmatprep.subr.mxu0 0.0
    %1860 = vmatpush1.msra.mxu0 %v1751
    %1861 = vmatprep.subr.mxu0 0.0
    %1862 = vmatpush1.msra.mxu0 %v1752
    %1863 = vmatprep.subr.mxu0 0.0
    %1864 = vmatpush1.msra.mxu0 %v1753
    %1865 = vmatprep.subr.mxu0 0.0
    %1866 = vmatpush1.msra.mxu0 %v1754
    %1867 = vmatprep.subr.mxu0 0.0
    %1868 = vmatpush1.msra.mxu0 %v1755
    %1869 = vmatprep.subr.mxu0 0.0
    %1870 = vmatpush1.msra.mxu0 %v1756
    %1871 = vmatprep.subr.mxu0 0.0
    %1872 = vmatpush1.msra.mxu0 %v1843
    %1873 = vmatprep.subr.mxu0 0.0
    %1874 = vmatpush1.msra.mxu0 0.0
    %1875 = vmatprep.subr.mxu0 0.0
    %1876 = vmatpush1.msra.mxu0 0.0
    %1877 = vmatprep.subr.mxu0 0.0
    %1878 = vmatpush1.msra.mxu0 0.0
    %1879 = vmatprep.subr.mxu0 0.0
    %1880 = vmatpush1.msra.mxu0 0.0
    %1881 = vmatprep.subr.mxu0 0.0
    %1882 = vmatpush1.msra.mxu0 0.0
    %1883 = vmatprep.subr.mxu0 0.0
    %1884 = vmatpush1.msra.mxu0 0.0
    %1885 = vmatprep.subr.mxu0 0.0
    %1886 = vmatpush1.msra.mxu0 0.0
    %1887 = vmatprep.subr.mxu0 0.0
    %1888 = vmatpush1.msra.mxu0 0.0
    %1889 = vmatprep.subr.mxu0 0.0
    %1890 = vmatpush1.msra.mxu0 0.0
    %1891 = vmatprep.subr.mxu0 0.0
    %1892 = vmatpush1.msra.mxu0 0.0
    %1893 = vmatprep.subr.mxu0 0.0
    %1894 = vmatpush1.msra.mxu0 0.0
    %1895 = vmatprep.subr.mxu0 0.0
    %1896 = vmatpush1.msra.mxu0 0.0
    %1897 = vmatprep.subr.mxu0 0.0
    %1898 = vmatpush1.msra.mxu0 0.0
    %1899 = vmatprep.subr.mxu0 0.0
    %1900 = vmatpush1.msra.mxu0 0.0
    %1901 = vmatprep.subr.mxu0 0.0
    %1902 = vmatpush1.msra.mxu0 0.0
    %1903 = vmatprep.subr.mxu0 0.0
    %1904 = vmatpush1.msra.mxu0 0.0
    %1905 = vmatprep.subr.mxu0 0.0
    %1906 = vmatpush1.msra.mxu0 0.0
    %1907 = vmatprep.subr.mxu0 0.0
    %1908 = vmatpush1.msra.mxu0 0.0
    %1909 = vmatprep.mubr.f32.mxu0 0.0
    %1910 = vmatmul.mubr.f32.gmra.mrb[0].mxu0 %v1840
    %v1911 = vpop.f32.mrb[0].mxu0
    %v1912 = vadd.f32 %v1835, %v1911
    %v1913 = vpop.f32.mrb[0].mxu0
    %1914 = vdwg.mxu0
    %v1915 = vld [vmem:[#allocation2 + $0x100] sm:$0x1f]
    %vm1916 = vcmask 39936
    %v1918 = vsel %vm1916, %v1743, 0
    %v1921 = vsel %vm283, %v1915, 0
    %1923 = vmatprep.subr.mxu0 0.0
    %1924 = vmatpush1.msra.mxu0 %v1921
    %1925 = vmatprep.subr.mxu0 0.0
    %1926 = vmatpush1.msra.mxu0 0.0
    %1927 = vmatprep.subr.mxu0 0.0
    %1928 = vmatpush1.msra.mxu0 0.0
    %1929 = vmatprep.subr.mxu0 0.0
    %1930 = vmatpush1.msra.mxu0 0.0
    %1931 = vmatprep.subr.mxu0 0.0
    %1932 = vmatpush1.msra.mxu0 0.0
    %1933 = vmatprep.subr.mxu0 0.0
    %1934 = vmatpush1.msra.mxu0 0.0
    %1935 = vmatprep.subr.mxu0 0.0
    %1936 = vmatpush1.msra.mxu0 0.0
    %1937 = vmatprep.subr.mxu0 0.0
    %1938 = vmatpush1.msra.mxu0 0.0
    %1939 = vmatprep.subr.mxu0 0.0
    %1940 = vmatpush1.msra.mxu0 0.0
    %1941 = vmatprep.subr.mxu0 0.0
    %1942 = vmatpush1.msra.mxu0 0.0
    %1943 = vmatprep.subr.mxu0 0.0
    %1944 = vmatpush1.msra.mxu0 0.0
    %1945 = vmatprep.subr.mxu0 0.0
    %1946 = vmatpush1.msra.mxu0 0.0
    %1947 = vmatprep.subr.mxu0 0.0
    %1948 = vmatpush1.msra.mxu0 0.0
    %1949 = vmatprep.subr.mxu0 0.0
    %1950 = vmatpush1.msra.mxu0 0.0
    %1951 = vmatprep.subr.mxu0 0.0
    %1952 = vmatpush1.msra.mxu0 0.0
    %1953 = vmatprep.subr.mxu0 0.0
    %1954 = vmatpush1.msra.mxu0 0.0
    %1955 = vmatprep.subr.mxu0 0.0
    %1956 = vmatpush1.msra.mxu0 0.0
    %1957 = vmatprep.subr.mxu0 0.0
    %1958 = vmatpush1.msra.mxu0 0.0
    %1959 = vmatprep.subr.mxu0 0.0
    %1960 = vmatpush1.msra.mxu0 0.0
    %1961 = vmatprep.subr.mxu0 0.0
    %1962 = vmatpush1.msra.mxu0 0.0
    %1963 = vmatprep.subr.mxu0 0.0
    %1964 = vmatpush1.msra.mxu0 0.0
    %1965 = vmatprep.subr.mxu0 0.0
    %1966 = vmatpush1.msra.mxu0 0.0
    %1967 = vmatprep.subr.mxu0 0.0
    %1968 = vmatpush1.msra.mxu0 0.0
    %1969 = vmatprep.subr.mxu0 0.0
    %1970 = vmatpush1.msra.mxu0 0.0
    %1971 = vmatprep.subr.mxu0 0.0
    %1972 = vmatpush1.msra.mxu0 0.0
    %1973 = vmatprep.subr.mxu0 0.0
    %1974 = vmatpush1.msra.mxu0 0.0
    %1975 = vmatprep.subr.mxu0 0.0
    %1976 = vmatpush1.msra.mxu0 0.0
    %1977 = vmatprep.subr.mxu0 0.0
    %1978 = vmatpush1.msra.mxu0 0.0
    %1979 = vmatprep.subr.mxu0 0.0
    %1980 = vmatpush1.msra.mxu0 0.0
    %1981 = vmatprep.subr.mxu0 0.0
    %1982 = vmatpush1.msra.mxu0 0.0
    %1983 = vmatprep.subr.mxu0 0.0
    %1984 = vmatpush1.msra.mxu0 0.0
    %1985 = vmatprep.subr.mxu0 0.0
    %1986 = vmatpush1.msra.mxu0 0.0
    %1987 = vmatprep.mubr.f32.mxu0 0.0
    %1988 = vmatmul.mubr.f32.gmra.mrb[0].mxu0 %v1918
    %v1989 = vpop.f32.mrb[0].mxu0
    %v1990 = vadd.f32 0.0, %v1989
    %v1991 = vpop.f32.mrb[0].mxu0
    %1992 = vdwg.mxu0
    %v1993 = vadd.f32 %v1912, %v1990
    %v1994 = vld [vmem:[#allocation2 + $0x108] sm:$0x1]
    %v1995 = vlaneseq
    %v1996 = vshrl.u32 %v1995, 7
    %v1997 = vsub.s32 0, %v1996
    %v1998 = vrot.slane %v1994, %v1997
    %v1999 = vadd.f32 %v1993, %v1998
    %v2000 = vmax.f32 %v1999, 0.0
    %v2001 = vld [vmem:[#allocation2 + $0x110] sm:$0x1f]
    %v2002 = vld [vmem:[#allocation2 + $0x118] sm:$0x1]
    %v2003 = vlaneseq
    %v2004 = vshrl.u32 %v2003, 7
    %v2005 = vsub.s32 0, %v2004
    %v2006 = vrot.slane %v2002, %v2005
    %v2008 = vsel %vm283, %v2001, 0
    %2010 = vmatprep.subr.mxu0 0.0
    %2011 = vmatpush1.msra.mxu0 %v2008
    %2012 = vmatprep.subr.mxu0 0.0
    %2013 = vmatpush1.msra.mxu0 0.0
    %2014 = vmatprep.subr.mxu0 0.0
    %2015 = vmatpush1.msra.mxu0 0.0
    %2016 = vmatprep.subr.mxu0 0.0
    %2017 = vmatpush1.msra.mxu0 0.0
    %2018 = vmatprep.subr.mxu0 0.0
    %2019 = vmatpush1.msra.mxu0 0.0
    %2020 = vmatprep.subr.mxu0 0.0
    %2021 = vmatpush1.msra.mxu0 0.0
    %2022 = vmatprep.subr.mxu0 0.0
    %2023 = vmatpush1.msra.mxu0 0.0
    %2024 = vmatprep.subr.mxu0 0.0
    %2025 = vmatpush1.msra.mxu0 0.0
    %2026 = vmatprep.subr.mxu0 0.0
    %2027 = vmatpush1.msra.mxu0 0.0
    %2028 = vmatprep.subr.mxu0 0.0
    %2029 = vmatpush1.msra.mxu0 0.0
    %2030 = vmatprep.subr.mxu0 0.0
    %2031 = vmatpush1.msra.mxu0 0.0
    %2032 = vmatprep.subr.mxu0 0.0
    %2033 = vmatpush1.msra.mxu0 0.0
    %2034 = vmatprep.subr.mxu0 0.0
    %2035 = vmatpush1.msra.mxu0 0.0
    %2036 = vmatprep.subr.mxu0 0.0
    %2037 = vmatpush1.msra.mxu0 0.0
    %2038 = vmatprep.subr.mxu0 0.0
    %2039 = vmatpush1.msra.mxu0 0.0
    %2040 = vmatprep.subr.mxu0 0.0
    %2041 = vmatpush1.msra.mxu0 0.0
    %2042 = vmatprep.subr.mxu0 0.0
    %2043 = vmatpush1.msra.mxu0 0.0
    %2044 = vmatprep.subr.mxu0 0.0
    %2045 = vmatpush1.msra.mxu0 0.0
    %2046 = vmatprep.subr.mxu0 0.0
    %2047 = vmatpush1.msra.mxu0 0.0
    %2048 = vmatprep.subr.mxu0 0.0
    %2049 = vmatpush1.msra.mxu0 0.0
    %2050 = vmatprep.subr.mxu0 0.0
    %2051 = vmatpush1.msra.mxu0 0.0
    %2052 = vmatprep.subr.mxu0 0.0
    %2053 = vmatpush1.msra.mxu0 0.0
    %2054 = vmatprep.subr.mxu0 0.0
    %2055 = vmatpush1.msra.mxu0 0.0
    %2056 = vmatprep.subr.mxu0 0.0
    %2057 = vmatpush1.msra.mxu0 0.0
    %2058 = vmatprep.subr.mxu0 0.0
    %2059 = vmatpush1.msra.mxu0 0.0
    %2060 = vmatprep.subr.mxu0 0.0
    %2061 = vmatpush1.msra.mxu0 0.0
    %2062 = vmatprep.subr.mxu0 0.0
    %2063 = vmatpush1.msra.mxu0 0.0
    %2064 = vmatprep.subr.mxu0 0.0
    %2065 = vmatpush1.msra.mxu0 0.0
    %2066 = vmatprep.subr.mxu0 0.0
    %2067 = vmatpush1.msra.mxu0 0.0
    %2068 = vmatprep.subr.mxu0 0.0
    %2069 = vmatpush1.msra.mxu0 0.0
    %2070 = vmatprep.subr.mxu0 0.0
    %2071 = vmatpush1.msra.mxu0 0.0
    %2072 = vmatprep.subr.mxu0 0.0
    %2073 = vmatpush1.msra.mxu0 0.0
    %2074 = vmatprep.mubr.f32.mxu0 0.0
    %2075 = vmatmul.mubr.f32.gmra.mrb[0].mxu0 %v1918
    %v2076 = vpop.f32.mrb[0].mxu0
    %v2077 = vadd.f32 %v2006, %v2076
    %v2078 = vpop.f32.mrb[0].mxu0
    %2079 = vdwg.mxu0
    %v2080 = vmax.f32 %v2077, 0.0
    %v2081 = vadd.f32 %v2000, %v2080
    %v2082 = vld [vmem:[#allocation2 + $0x120] sm:$0xff]
    %v2083 = vld [vmem:[#allocation2 + $0x128] sm:$0xff]
    %v2084 = vld [vmem:[#allocation2 + $0x130] sm:$0xff]
    %v2085 = vld [vmem:[#allocation2 + $0x138] sm:$0xff]
    %v2086 = vld [vmem:[#allocation2 + $0x140] sm:$0xff]
    %v2087 = vld [vmem:[#allocation2 + $0x148] sm:$0xff]
    %v2088 = vld [vmem:[#allocation2 + $0x150] sm:$0xff]
    %v2089 = vld [vmem:[#allocation2 + $0x158] sm:$0xff]
    %v2090 = vld [vmem:[#allocation2 + $0x160] sm:$0x1]
    %v2091 = vld [vmem:[#allocation2 + $0x168] sm:$0x1]
    %v2092 = vlaneseq
    %v2093 = vshrl.u32 %v2092, 7
    %v2094 = vsub.s32 0, %v2093
    %v2095 = vrot.slane %v2091, %v2094
    %vm2096 = vcmask 531456
    %v2098 = vsel %vm2096, %v2081, 0
    %v2101 = vsel %vm778, %v2090, 0
    %2103 = vmatprep.subr.mxu0 0.0
    %2104 = vmatpush1.msra.mxu0 %v2082
    %2105 = vmatprep.subr.mxu0 0.0
    %2106 = vmatpush1.msra.mxu0 %v2083
    %2107 = vmatprep.subr.mxu0 0.0
    %2108 = vmatpush1.msra.mxu0 %v2084
    %2109 = vmatprep.subr.mxu0 0.0
    %2110 = vmatpush1.msra.mxu0 %v2085
    %2111 = vmatprep.subr.mxu0 0.0
    %2112 = vmatpush1.msra.mxu0 %v2086
    %2113 = vmatprep.subr.mxu0 0.0
    %2114 = vmatpush1.msra.mxu0 %v2087
    %2115 = vmatprep.subr.mxu0 0.0
    %2116 = vmatpush1.msra.mxu0 %v2088
    %2117 = vmatprep.subr.mxu0 0.0
    %2118 = vmatpush1.msra.mxu0 %v2089
    %2119 = vmatprep.subr.mxu0 0.0
    %2120 = vmatpush1.msra.mxu0 %v2101
    %2121 = vmatprep.subr.mxu0 0.0
    %2122 = vmatpush1.msra.mxu0 0.0
    %2123 = vmatprep.subr.mxu0 0.0
    %2124 = vmatpush1.msra.mxu0 0.0
    %2125 = vmatprep.subr.mxu0 0.0
    %2126 = vmatpush1.msra.mxu0 0.0
    %2127 = vmatprep.subr.mxu0 0.0
    %2128 = vmatpush1.msra.mxu0 0.0
    %2129 = vmatprep.subr.mxu0 0.0
    %2130 = vmatpush1.msra.mxu0 0.0
    %2131 = vmatprep.subr.mxu0 0.0
    %2132 = vmatpush1.msra.mxu0 0.0
    %2133 = vmatprep.subr.mxu0 0.0
    %2134 = vmatpush1.msra.mxu0 0.0
    %2135 = vmatprep.subr.mxu0 0.0
    %2136 = vmatpush1.msra.mxu0 0.0
    %2137 = vmatprep.subr.mxu0 0.0
    %2138 = vmatpush1.msra.mxu0 0.0
    %2139 = vmatprep.subr.mxu0 0.0
    %2140 = vmatpush1.msra.mxu0 0.0
    %2141 = vmatprep.subr.mxu0 0.0
    %2142 = vmatpush1.msra.mxu0 0.0
    %2143 = vmatprep.subr.mxu0 0.0
    %2144 = vmatpush1.msra.mxu0 0.0
    %2145 = vmatprep.subr.mxu0 0.0
    %2146 = vmatpush1.msra.mxu0 0.0
    %2147 = vmatprep.subr.mxu0 0.0
    %2148 = vmatpush1.msra.mxu0 0.0
    %2149 = vmatprep.subr.mxu0 0.0
    %2150 = vmatpush1.msra.mxu0 0.0
    %2151 = vmatprep.subr.mxu0 0.0
    %2152 = vmatpush1.msra.mxu0 0.0
    %2153 = vmatprep.subr.mxu0 0.0
    %2154 = vmatpush1.msra.mxu0 0.0
    %2155 = vmatprep.subr.mxu0 0.0
    %2156 = vmatpush1.msra.mxu0 0.0
    %2157 = vmatprep.subr.mxu0 0.0
    %2158 = vmatpush1.msra.mxu0 0.0
    %2159 = vmatprep.subr.mxu0 0.0
    %2160 = vmatpush1.msra.mxu0 0.0
    %2161 = vmatprep.subr.mxu0 0.0
    %2162 = vmatpush1.msra.mxu0 0.0
    %2163 = vmatprep.subr.mxu0 0.0
    %2164 = vmatpush1.msra.mxu0 0.0
    %2165 = vmatprep.subr.mxu0 0.0
    %2166 = vmatpush1.msra.mxu0 0.0
    %2167 = vmatprep.mubr.f32.mxu0 0.0
    %2168 = vmatmul.mubr.f32.gmra.mrb[0].mxu0 %v2098
    %v2169 = vpop.f32.mrb[0].mxu0
    %v2170 = vadd.f32 %v2095, %v2169
    %v2171 = vpop.f32.mrb[0].mxu0
    %2172 = vdwg.mxu0
    %v2173 = vld [vmem:[#allocation2 + $0x170] sm:$0xff]
    %v2174 = vld [vmem:[#allocation2 + $0x178] sm:$0xff]
    %v2175 = vld [vmem:[#allocation2 + $0x180] sm:$0xff]
    %v2176 = vld [vmem:[#allocation2 + $0x188] sm:$0xff]
    %v2177 = vld [vmem:[#allocation2 + $0x190] sm:$0x1]
    %v2178 = vlaneseq
    %v2179 = vshrl.u32 %v2178, 7
    %v2180 = vsub.s32 0, %v2179
    %v2181 = vrot.slane %v2177, %v2180
    %vm2182 = vcmask 261120
    %v2184 = vsel %vm2182, %v2170, 0
    %2186 = vmatprep.subr.mxu0 0.0
    %2187 = vmatpush1.msra.mxu0 %v2173
    %2188 = vmatprep.subr.mxu0 0.0
    %2189 = vmatpush1.msra.mxu0 %v2174
    %2190 = vmatprep.subr.mxu0 0.0
    %2191 = vmatpush1.msra.mxu0 %v2175
    %2192 = vmatprep.subr.mxu0 0.0
    %2193 = vmatpush1.msra.mxu0 %v2176
    %2194 = vmatprep.subr.mxu0 0.0
    %2195 = vmatpush1.msra.mxu0 0.0
    %2196 = vmatprep.subr.mxu0 0.0
    %2197 = vmatpush1.msra.mxu0 0.0
    %2198 = vmatprep.subr.mxu0 0.0
    %2199 = vmatpush1.msra.mxu0 0.0
    %2200 = vmatprep.subr.mxu0 0.0
    %2201 = vmatpush1.msra.mxu0 0.0
    %2202 = vmatprep.subr.mxu0 0.0
    %2203 = vmatpush1.msra.mxu0 0.0
    %2204 = vmatprep.subr.mxu0 0.0
    %2205 = vmatpush1.msra.mxu0 0.0
    %2206 = vmatprep.subr.mxu0 0.0
    %2207 = vmatpush1.msra.mxu0 0.0
    %2208 = vmatprep.subr.mxu0 0.0
    %2209 = vmatpush1.msra.mxu0 0.0
    %2210 = vmatprep.subr.mxu0 0.0
    %2211 = vmatpush1.msra.mxu0 0.0
    %2212 = vmatprep.subr.mxu0 0.0
    %2213 = vmatpush1.msra.mxu0 0.0
    %2214 = vmatprep.subr.mxu0 0.0
    %2215 = vmatpush1.msra.mxu0 0.0
    %2216 = vmatprep.subr.mxu0 0.0
    %2217 = vmatpush1.msra.mxu0 0.0
    %2218 = vmatprep.subr.mxu0 0.0
    %2219 = vmatpush1.msra.mxu0 0.0
    %2220 = vmatprep.subr.mxu0 0.0
    %2221 = vmatpush1.msra.mxu0 0.0
    %2222 = vmatprep.subr.mxu0 0.0
    %2223 = vmatpush1.msra.mxu0 0.0
    %2224 = vmatprep.subr.mxu0 0.0
    %2225 = vmatpush1.msra.mxu0 0.0
    %2226 = vmatprep.subr.mxu0 0.0
    %2227 = vmatpush1.msra.mxu0 0.0
    %2228 = vmatprep.subr.mxu0 0.0
    %2229 = vmatpush1.msra.mxu0 0.0
    %2230 = vmatprep.subr.mxu0 0.0
    %2231 = vmatpush1.msra.mxu0 0.0
    %2232 = vmatprep.subr.mxu0 0.0
    %2233 = vmatpush1.msra.mxu0 0.0
    %2234 = vmatprep.subr.mxu0 0.0
    %2235 = vmatpush1.msra.mxu0 0.0
    %2236 = vmatprep.subr.mxu0 0.0
    %2237 = vmatpush1.msra.mxu0 0.0
    %2238 = vmatprep.subr.mxu0 0.0
    %2239 = vmatpush1.msra.mxu0 0.0
    %2240 = vmatprep.subr.mxu0 0.0
    %2241 = vmatpush1.msra.mxu0 0.0
    %2242 = vmatprep.subr.mxu0 0.0
    %2243 = vmatpush1.msra.mxu0 0.0
    %2244 = vmatprep.subr.mxu0 0.0
    %2245 = vmatpush1.msra.mxu0 0.0
    %2246 = vmatprep.subr.mxu0 0.0
    %2247 = vmatpush1.msra.mxu0 0.0
    %2248 = vmatprep.subr.mxu0 0.0
    %2249 = vmatpush1.msra.mxu0 0.0
    %2250 = vmatprep.mubr.f32.mxu0 0.0
    %2251 = vmatmul.mubr.f32.gmra.mrb[0].mxu0 %v2184
    %v2252 = vpop.f32.mrb[0].mxu0
    %v2253 = vadd.f32 %v2181, %v2252
    %v2254 = vpop.f32.mrb[0].mxu0
    %2255 = vdwg.mxu0
    %vm2256 = vcmask 1024
    %2257 = vst.msk [vmem:[%s5] sm:$0x3] %vm2256, %v2253
    // Predicated region
    $region26: #{inv_sales_critic_forward.1} parent=1 // pred_check
      _
    $region27: #{inv_sales_critic_forward.1} parent=1 // pred_check_branch
      %2259 = sbr.rel (0) target = $region29
    $region28: #{inv_sales_critic_forward.1} parent=1 // pred_region
      _
    $region29: #{inv_sales_critic_forward.1} parent=1 // pred_fallthru
      _
    // Predicated region
    $region30: #{inv_sales_critic_forward.1} parent=1 // pred_check
      _
    $region31: #{inv_sales_critic_forward.1} parent=1 // pred_check_branch
      %2261 = sbr.rel (0) target = $region33
    $region32: #{inv_sales_critic_forward.1} parent=1 // pred_region
      _
    $region33: #{inv_sales_critic_forward.1} parent=1 // pred_fallthru
      _
    %2262 = vsyncpa [#allocation3], 1

</llo_original>
